<compile_context>
chip_gen: v6e
topology: v6e:2x2x1
jax: 0.10.0
libtpu: 0.0.40
codegen_flags: <defaults>
</compile_context>

<pallas_src>
import jax
import jax.numpy as jnp
from jax.experimental import pallas as pl
from jax.experimental.pallas import tpu as pltpu

DOF = 7
POSE_DIM = 7
HIDDEN = 512
TIME_EMBED = 64
QP_DIM = DOF + POSE_DIM            # 14
IN_DIM = QP_DIM + TIME_EMBED       # 78  (LayerNorm normalizes over this many)
QP_SLOT = 64                       # lane slot reserved for [q_t|pose] (zero-padded 14->64)
IN_PAD = QP_SLOT + TIME_EMBED      # 128 : lane-dense layer-1 input (one vreg wide)
OUT_PAD = 128                      # lane-dense output; real outputs live in [:, :DOF]
LN_EPS = 1e-5                      # PyTorch nn.LayerNorm default
DEFAULT_BM = 512                   # batch tile


def _silu(x):
    return x * jax.nn.sigmoid(x)


def _round_up(x, m):
    return (x + m - 1) // m * m


def denoiser_kernel(qp_ref, t_ref,
                    wt1_ref, bt1_ref, wt2_ref, bt2_ref,
                    gamma_ref, beta_ref,
                    w1_ref, b1_ref, w2_ref, b2_ref,
                    w3_ref, b3_ref, w4_ref, b4_ref,
                    out_ref):
    f32 = jnp.float32
    bf16 = jnp.bfloat16

    # ---- time embedding: Linear(1,64) -> SiLU -> Linear(64,64) (f32 except MXU dot) ----
    t = t_ref[...]                                           # (BM, 1) f32
    h_t = _silu(t * wt1_ref[...] + bt1_ref[...])             # (BM, 64); K=1 matmul == broadcast
    t_emb = (jnp.dot(h_t.astype(bf16), wt2_ref[...],
                     preferred_element_type=f32) + bt2_ref[...])   # (BM, 64) f32

    # ---- lane-dense concat: [qp(14) | 0(50) | t_emb(64)] -> 128 lanes ----
    x = jnp.concatenate([qp_ref[...], t_emb], axis=-1)       # (BM, 128) f32

    # ---- LayerNorm over the 78 real features (pad lanes are zero; gamma/beta=0 there) ----
    n = float(IN_DIM)
    s = jnp.sum(x, axis=-1, keepdims=True)
    s2 = jnp.sum(x * x, axis=-1, keepdims=True)
    mean = s / n
    var = s2 / n - mean * mean
    rstd = jax.lax.rsqrt(var + LN_EPS)
    x_n = (x - mean) * rstd * gamma_ref[...] + beta_ref[...]

    # ---- MLP: 128->512 -> SiLU -> 512->512 -> SiLU -> 512->512 -> SiLU -> 512->128 ----
    # TODO(synk): nn.Dropout(0.1) is train-mode only; eval-mode identity is implemented here.
    h = _silu(jnp.dot(x_n.astype(bf16), w1_ref[...],
                      preferred_element_type=f32) + b1_ref[...])
    h = _silu(jnp.dot(h.astype(bf16), w2_ref[...],
                      preferred_element_type=f32) + b2_ref[...])
    h = _silu(jnp.dot(h.astype(bf16), w3_ref[...],
                      preferred_element_type=f32) + b3_ref[...])
    out_ref[...] = (jnp.dot(h.astype(bf16), w4_ref[...],
                            preferred_element_type=f32) + b4_ref[...])   # (BM, 128)


def init_params(key):
    """PyTorch-style (uniform +-1/sqrt(fan_in)) init, weights stored as [in, out]."""
    def linear(k, fan_in, fan_out):
        kw, kb = jax.random.split(k)
        bound = 1.0 / jnp.sqrt(float(fan_in))
        w = jax.random.uniform(kw, (fan_in, fan_out), jnp.float32, -bound, bound)
        b = jax.random.uniform(kb, (1, fan_out), jnp.float32, -bound, bound)
        return w, b

    ks = jax.random.split(key, 6)
    wt1, bt1 = linear(ks[0], 1, TIME_EMBED)
    wt2, bt2 = linear(ks[1], TIME_EMBED, TIME_EMBED)
    w1, b1 = linear(ks[2], IN_DIM, HIDDEN)
    w2, b2 = linear(ks[3], HIDDEN, HIDDEN)
    w3, b3 = linear(ks[4], HIDDEN, HIDDEN)
    w4, b4 = linear(ks[5], HIDDEN, DOF)
    return {
        "wt1": wt1, "bt1": bt1, "wt2": wt2, "bt2": bt2,
        "ln_gamma": jnp.ones((1, IN_DIM), jnp.float32),
        "ln_beta": jnp.zeros((1, IN_DIM), jnp.float32),
        "w1": w1, "b1": b1, "w2": w2, "b2": b2,
        "w3": w3, "b3": b3, "w4": w4, "b4": b4,
    }


def prepare_params(params):
    """One-time pad / cast of raw f32 params into the kernel's lane-dense bf16 layout."""
    f32, bf16 = jnp.float32, jnp.bfloat16
    g, be = params["ln_gamma"], params["ln_beta"]

    gamma_pad = jnp.zeros((1, IN_PAD), f32)
    gamma_pad = gamma_pad.at[:, :QP_DIM].set(g[:, :QP_DIM])
    gamma_pad = gamma_pad.at[:, QP_SLOT:].set(g[:, QP_DIM:])

    beta_pad = jnp.zeros((1, IN_PAD), f32)
    beta_pad = beta_pad.at[:, :QP_DIM].set(be[:, :QP_DIM])
    beta_pad = beta_pad.at[:, QP_SLOT:].set(be[:, QP_DIM:])

    w1 = params["w1"]                                       # (78, 512)
    w1_pad = jnp.zeros((IN_PAD, HIDDEN), f32)
    w1_pad = w1_pad.at[:QP_DIM].set(w1[:QP_DIM])
    w1_pad = w1_pad.at[QP_SLOT:].set(w1[QP_DIM:])

    w4_pad = jnp.zeros((HIDDEN, OUT_PAD), f32).at[:, :DOF].set(params["w4"])
    b4_pad = jnp.zeros((1, OUT_PAD), f32).at[:, :DOF].set(params["b4"])

    return {
        "wt1": params["wt1"].astype(f32), "bt1": params["bt1"].astype(f32),
        "wt2": params["wt2"].astype(bf16), "bt2": params["bt2"].astype(f32),
        "gamma": gamma_pad, "beta": beta_pad,
        "w1": w1_pad.astype(bf16), "b1": params["b1"].astype(f32),
        "w2": params["w2"].astype(bf16), "b2": params["b2"].astype(f32),
        "w3": params["w3"].astype(bf16), "b3": params["b3"].astype(f32),
        "w4": w4_pad.astype(bf16), "b4": b4_pad,
    }


@jax.jit
def diff_ik_denoiser(kparams, q_t, pose, t):
    B = q_t.shape[0]
    bm = min(DEFAULT_BM, _round_up(B, 8))
    b_pad = _round_up(B, bm)

    qp = jnp.concatenate([q_t, pose], axis=-1).astype(jnp.float32)            # (B, 14)
    qp_pad = jnp.zeros((b_pad, QP_SLOT), jnp.float32).at[:B, :QP_DIM].set(qp)  # (Bp, 64)
    t2 = jnp.zeros((b_pad, 1), jnp.float32).at[:B, 0].set(t.astype(jnp.float32))

    def row(cols):
        return pl.BlockSpec((bm, cols), lambda i: (i, 0))

    def full(a):
        return pl.BlockSpec(a.shape, lambda i: (0, 0))     # resident across the grid

    kp = kparams
    weights = (kp["wt1"], kp["bt1"], kp["wt2"], kp["bt2"],
               kp["gamma"], kp["beta"],
               kp["w1"], kp["b1"], kp["w2"], kp["b2"],
               kp["w3"], kp["b3"], kp["w4"], kp["b4"])

    out = pl.pallas_call(
        denoiser_kernel,
        grid=(b_pad // bm,),
        in_specs=[row(QP_SLOT), row(1)] + [full(w) for w in weights],
        out_specs=row(OUT_PAD),
        out_shape=jax.ShapeDtypeStruct((b_pad, OUT_PAD), jnp.float32),
        compiler_params=pltpu.CompilerParams(
            dimension_semantics=("parallel",)),
    )(qp_pad, t2, *weights)
    return out[:B, :DOF]


def reference_forward(params, q_t, pose, t):
    """Pure-JAX f32 reference matching the PyTorch module (eval mode)."""
    t2 = t.reshape(-1, 1).astype(jnp.float32)
    h_t = _silu(t2 * params["wt1"] + params["bt1"])
    t_emb = h_t @ params["wt2"] + params["bt2"]
    x = jnp.concatenate([q_t, pose, t_emb], axis=-1).astype(jnp.float32)
    mean = jnp.mean(x, axis=-1, keepdims=True)
    var = jnp.mean((x - mean) ** 2, axis=-1, keepdims=True)
    x_n = (x - mean) * jax.lax.rsqrt(var + LN_EPS) * params["ln_gamma"] + params["ln_beta"]
    h = _silu(x_n @ params["w1"] + params["b1"])
    h = _silu(h @ params["w2"] + params["b2"])
    h = _silu(h @ params["w3"] + params["b3"])
    return h @ params["w4"] + params["b4"]


if __name__ == "__main__":
    key = jax.random.PRNGKey(0)
    k_params, k_q, k_p, k_t = jax.random.split(key, 4)

    B = 8
    params = init_params(k_params)
    kparams = prepare_params(params)          # pad + bf16-cast once; reused every call
    q_t = jax.random.normal(k_q, (B, DOF), jnp.float32)
    pose = jax.random.normal(k_p, (B, POSE_DIM), jnp.float32)
    t = jax.random.uniform(k_t, (B,), jnp.float32)

    out = diff_ik_denoiser(kparams, q_t, pose, t)
    jax.block_until_ready(out)
    assert out.shape == (B, DOF) and out.dtype == jnp.float32
    assert bool(jnp.all(jnp.isfinite(out)))

    ref = reference_forward(params, q_t, pose, t)
    rel = float(jnp.linalg.norm(out - ref) / (jnp.linalg.norm(ref) + 1e-12))
    assert rel < 5e-2, f"relative error too large vs f32 reference: {rel}"
    print("KERNEL_OK")
</pallas_src>

<mosaic_0001>
module attributes {stable_mosaic.version = 11 : i64} {
  func.func @denoiser_kernel(%arg0: i32, %arg1: memref<8x64xf32, #tpu.memory_space<vmem>>, %arg2: memref<8x1xf32, #tpu.memory_space<vmem>>, %arg3: memref<1x64xf32, #tpu.memory_space<vmem>>, %arg4: memref<1x64xf32, #tpu.memory_space<vmem>>, %arg5: memref<64x64xbf16, #tpu.memory_space<vmem>>, %arg6: memref<1x64xf32, #tpu.memory_space<vmem>>, %arg7: memref<1x128xf32, #tpu.memory_space<vmem>>, %arg8: memref<1x128xf32, #tpu.memory_space<vmem>>, %arg9: memref<128x512xbf16, #tpu.memory_space<vmem>>, %arg10: memref<1x512xf32, #tpu.memory_space<vmem>>, %arg11: memref<512x512xbf16, #tpu.memory_space<vmem>>, %arg12: memref<1x512xf32, #tpu.memory_space<vmem>>, %arg13: memref<512x512xbf16, #tpu.memory_space<vmem>>, %arg14: memref<1x512xf32, #tpu.memory_space<vmem>>, %arg15: memref<512x128xbf16, #tpu.memory_space<vmem>>, %arg16: memref<1x128xf32, #tpu.memory_space<vmem>>, %arg17: memref<8x128xf32, #tpu.memory_space<vmem>>) attributes {dimension_semantics = [#tpu.dimension_semantics<parallel>], iteration_bounds = array<i64: 1>, scalar_prefetch = 0 : i64, scratch_operands = 0 : i64, tpu.core_type = #tpu.core_type<tc>, window_params = [{transform_indices = @transform_0, window_bounds = array<i64: 8, 64>}, {transform_indices = @transform_1, window_bounds = array<i64: 8, 1>}, {pipeline_mode = #tpu.pipeline_mode<synchronous>, transform_indices = @transform_2, window_bounds = array<i64: 1, 64>}, {pipeline_mode = #tpu.pipeline_mode<synchronous>, transform_indices = @transform_3, window_bounds = array<i64: 1, 64>}, {pipeline_mode = #tpu.pipeline_mode<synchronous>, transform_indices = @transform_4, window_bounds = array<i64: 64, 64>}, {pipeline_mode = #tpu.pipeline_mode<synchronous>, transform_indices = @transform_5, window_bounds = array<i64: 1, 64>}, {pipeline_mode = #tpu.pipeline_mode<synchronous>, transform_indices = @transform_6, window_bounds = array<i64: 1, 128>}, {pipeline_mode = #tpu.pipeline_mode<synchronous>, transform_indices = @transform_7, window_bounds = array<i64: 1, 128>}, {pipeline_mode = #tpu.pipeline_mode<synchronous>, transform_indices = @transform_8, window_bounds = array<i64: 128, 512>}, {pipeline_mode = #tpu.pipeline_mode<synchronous>, transform_indices = @transform_9, window_bounds = array<i64: 1, 512>}, {pipeline_mode = #tpu.pipeline_mode<synchronous>, transform_indices = @transform_10, window_bounds = array<i64: 512, 512>}, {pipeline_mode = #tpu.pipeline_mode<synchronous>, transform_indices = @transform_11, window_bounds = array<i64: 1, 512>}, {pipeline_mode = #tpu.pipeline_mode<synchronous>, transform_indices = @transform_12, window_bounds = array<i64: 512, 512>}, {pipeline_mode = #tpu.pipeline_mode<synchronous>, transform_indices = @transform_13, window_bounds = array<i64: 1, 512>}, {pipeline_mode = #tpu.pipeline_mode<synchronous>, transform_indices = @transform_14, window_bounds = array<i64: 512, 128>}, {pipeline_mode = #tpu.pipeline_mode<synchronous>, transform_indices = @transform_15, window_bounds = array<i64: 1, 128>}, {transform_indices = @transform_16, window_bounds = array<i64: 8, 128>}]} {
    %c0 = arith.constant 0 : index
    %c0_0 = arith.constant 0 : index
    %0 = vector.load %arg2[%c0, %c0_0] : memref<8x1xf32, #tpu.memory_space<vmem>>, vector<8x1xf32>
    %c0_1 = arith.constant 0 : index
    %c0_2 = arith.constant 0 : index
    %1 = vector.load %arg3[%c0_1, %c0_2] : memref<1x64xf32, #tpu.memory_space<vmem>>, vector<1x64xf32>
    %2 = vector.broadcast %0 : vector<8x1xf32> to vector<8x64xf32>
    %3 = vector.broadcast %1 : vector<1x64xf32> to vector<8x64xf32>
    %4 = arith.mulf %2, %3 : vector<8x64xf32>
    %c0_3 = arith.constant 0 : index
    %c0_4 = arith.constant 0 : index
    %5 = vector.load %arg4[%c0_3, %c0_4] : memref<1x64xf32, #tpu.memory_space<vmem>>, vector<1x64xf32>
    %6 = vector.broadcast %5 : vector<1x64xf32> to vector<8x64xf32>
    %7 = arith.addf %4, %6 : vector<8x64xf32>
    %8 = arith.negf %7 : vector<8x64xf32>
    %9 = math.exp %8 : vector<8x64xf32>
    %cst = arith.constant 1.000000e+00 : f32
    %10 = vector.broadcast %cst : f32 to vector<8x64xf32>
    %11 = arith.addf %10, %9 : vector<8x64xf32>
    %12 = arith.divf %10, %11 : vector<8x64xf32>
    %13 = arith.mulf %7, %12 : vector<8x64xf32>
    %14 = arith.truncf %13 : vector<8x64xf32> to vector<8x64xbf16>
    %c0_5 = arith.constant 0 : index
    %c0_6 = arith.constant 0 : index
    %15 = vector.load %arg5[%c0_5, %c0_6] : memref<64x64xbf16, #tpu.memory_space<vmem>>, vector<64x64xbf16>
    %cst_7 = arith.constant dense<0.000000e+00> : vector<8x64xf32>
    %16 = tpu.matmul %14, %15, %cst_7 {dimension_numbers = #tpu.dot_dimension_numbers<[1], [0], [0], [1], [0, 0, 1, 1], [], []>} : vector<8x64xbf16>, vector<64x64xbf16>, vector<8x64xf32> -> vector<8x64xf32>
    %c0_8 = arith.constant 0 : index
    %c0_9 = arith.constant 0 : index
    %17 = vector.load %arg6[%c0_8, %c0_9] : memref<1x64xf32, #tpu.memory_space<vmem>>, vector<1x64xf32>
    %18 = vector.broadcast %17 : vector<1x64xf32> to vector<8x64xf32>
    %19 = arith.addf %16, %18 : vector<8x64xf32>
    %c0_10 = arith.constant 0 : index
    %c0_11 = arith.constant 0 : index
    %20 = vector.load %arg1[%c0_10, %c0_11] : memref<8x64xf32, #tpu.memory_space<vmem>>, vector<8x64xf32>
    %21 = tpu.concatenate %20, %19 in 1 : vector<8x64xf32>, vector<8x64xf32> -> vector<8x128xf32>
    %cst_12 = arith.constant dense<0.000000e+00> : vector<8xf32>
    %22 = vector.multi_reduction <add>, %21, %cst_12 [1] : vector<8x128xf32> to vector<8xf32>
    %23 = vector.shape_cast %22 : vector<8xf32> to vector<8x1xf32>
    %24 = arith.mulf %21, %21 : vector<8x128xf32>
    %cst_13 = arith.constant dense<0.000000e+00> : vector<8xf32>
    %25 = vector.multi_reduction <add>, %24, %cst_13 [1] : vector<8x128xf32> to vector<8xf32>
    %26 = vector.shape_cast %25 : vector<8xf32> to vector<8x1xf32>
    %cst_14 = arith.constant 7.800000e+01 : f32
    %27 = vector.broadcast %cst_14 : f32 to vector<8x1xf32>
    %28 = arith.divf %23, %27 : vector<8x1xf32>
    %cst_15 = arith.constant 7.800000e+01 : f32
    %29 = vector.broadcast %cst_15 : f32 to vector<8x1xf32>
    %30 = arith.divf %26, %29 : vector<8x1xf32>
    %31 = arith.mulf %28, %28 : vector<8x1xf32>
    %32 = arith.subf %30, %31 : vector<8x1xf32>
    %cst_16 = arith.constant 9.99999974E-6 : f32
    %33 = vector.broadcast %cst_16 : f32 to vector<8x1xf32>
    %34 = arith.addf %32, %33 : vector<8x1xf32>
    %35 = math.rsqrt %34 : vector<8x1xf32>
    %36 = vector.broadcast %28 : vector<8x1xf32> to vector<8x128xf32>
    %37 = arith.subf %21, %36 : vector<8x128xf32>
    %38 = vector.broadcast %35 : vector<8x1xf32> to vector<8x128xf32>
    %39 = arith.mulf %37, %38 : vector<8x128xf32>
    %c0_17 = arith.constant 0 : index
    %c0_18 = arith.constant 0 : index
    %40 = vector.load %arg7[%c0_17, %c0_18] : memref<1x128xf32, #tpu.memory_space<vmem>>, vector<1x128xf32>
    %41 = vector.broadcast %40 : vector<1x128xf32> to vector<8x128xf32>
    %42 = arith.mulf %39, %41 : vector<8x128xf32>
    %c0_19 = arith.constant 0 : index
    %c0_20 = arith.constant 0 : index
    %43 = vector.load %arg8[%c0_19, %c0_20] : memref<1x128xf32, #tpu.memory_space<vmem>>, vector<1x128xf32>
    %44 = vector.broadcast %43 : vector<1x128xf32> to vector<8x128xf32>
    %45 = arith.addf %42, %44 : vector<8x128xf32>
    %46 = arith.truncf %45 : vector<8x128xf32> to vector<8x128xbf16>
    %c0_21 = arith.constant 0 : index
    %c0_22 = arith.constant 0 : index
    %47 = vector.load %arg9[%c0_21, %c0_22] : memref<128x512xbf16, #tpu.memory_space<vmem>>, vector<128x512xbf16>
    %cst_23 = arith.constant dense<0.000000e+00> : vector<8x512xf32>
    %48 = tpu.matmul %46, %47, %cst_23 {dimension_numbers = #tpu.dot_dimension_numbers<[1], [0], [0], [1], [0, 0, 1, 1], [], []>} : vector<8x128xbf16>, vector<128x512xbf16>, vector<8x512xf32> -> vector<8x512xf32>
    %c0_24 = arith.constant 0 : index
    %c0_25 = arith.constant 0 : index
    %49 = vector.load %arg10[%c0_24, %c0_25] : memref<1x512xf32, #tpu.memory_space<vmem>>, vector<1x512xf32>
    %50 = vector.broadcast %49 : vector<1x512xf32> to vector<8x512xf32>
    %51 = arith.addf %48, %50 : vector<8x512xf32>
    %52 = arith.negf %51 : vector<8x512xf32>
    %53 = math.exp %52 : vector<8x512xf32>
    %cst_26 = arith.constant 1.000000e+00 : f32
    %54 = vector.broadcast %cst_26 : f32 to vector<8x512xf32>
    %55 = arith.addf %54, %53 : vector<8x512xf32>
    %56 = arith.divf %54, %55 : vector<8x512xf32>
    %57 = arith.mulf %51, %56 : vector<8x512xf32>
    %58 = arith.truncf %57 : vector<8x512xf32> to vector<8x512xbf16>
    %c0_27 = arith.constant 0 : index
    %c0_28 = arith.constant 0 : index
    %59 = vector.load %arg11[%c0_27, %c0_28] : memref<512x512xbf16, #tpu.memory_space<vmem>>, vector<512x512xbf16>
    %cst_29 = arith.constant dense<0.000000e+00> : vector<8x512xf32>
    %60 = tpu.matmul %58, %59, %cst_29 {dimension_numbers = #tpu.dot_dimension_numbers<[1], [0], [0], [1], [0, 0, 1, 1], [], []>} : vector<8x512xbf16>, vector<512x512xbf16>, vector<8x512xf32> -> vector<8x512xf32>
    %c0_30 = arith.constant 0 : index
    %c0_31 = arith.constant 0 : index
    %61 = vector.load %arg12[%c0_30, %c0_31] : memref<1x512xf32, #tpu.memory_space<vmem>>, vector<1x512xf32>
    %62 = vector.broadcast %61 : vector<1x512xf32> to vector<8x512xf32>
    %63 = arith.addf %60, %62 : vector<8x512xf32>
    %64 = arith.negf %63 : vector<8x512xf32>
    %65 = math.exp %64 : vector<8x512xf32>
    %cst_32 = arith.constant 1.000000e+00 : f32
    %66 = vector.broadcast %cst_32 : f32 to vector<8x512xf32>
    %67 = arith.addf %66, %65 : vector<8x512xf32>
    %68 = arith.divf %66, %67 : vector<8x512xf32>
    %69 = arith.mulf %63, %68 : vector<8x512xf32>
    %70 = arith.truncf %69 : vector<8x512xf32> to vector<8x512xbf16>
    %c0_33 = arith.constant 0 : index
    %c0_34 = arith.constant 0 : index
    %71 = vector.load %arg13[%c0_33, %c0_34] : memref<512x512xbf16, #tpu.memory_space<vmem>>, vector<512x512xbf16>
    %cst_35 = arith.constant dense<0.000000e+00> : vector<8x512xf32>
    %72 = tpu.matmul %70, %71, %cst_35 {dimension_numbers = #tpu.dot_dimension_numbers<[1], [0], [0], [1], [0, 0, 1, 1], [], []>} : vector<8x512xbf16>, vector<512x512xbf16>, vector<8x512xf32> -> vector<8x512xf32>
    %c0_36 = arith.constant 0 : index
    %c0_37 = arith.constant 0 : index
    %73 = vector.load %arg14[%c0_36, %c0_37] : memref<1x512xf32, #tpu.memory_space<vmem>>, vector<1x512xf32>
    %74 = vector.broadcast %73 : vector<1x512xf32> to vector<8x512xf32>
    %75 = arith.addf %72, %74 : vector<8x512xf32>
    %76 = arith.negf %75 : vector<8x512xf32>
    %77 = math.exp %76 : vector<8x512xf32>
    %cst_38 = arith.constant 1.000000e+00 : f32
    %78 = vector.broadcast %cst_38 : f32 to vector<8x512xf32>
    %79 = arith.addf %78, %77 : vector<8x512xf32>
    %80 = arith.divf %78, %79 : vector<8x512xf32>
    %81 = arith.mulf %75, %80 : vector<8x512xf32>
    %82 = arith.truncf %81 : vector<8x512xf32> to vector<8x512xbf16>
    %c0_39 = arith.constant 0 : index
    %c0_40 = arith.constant 0 : index
    %83 = vector.load %arg15[%c0_39, %c0_40] : memref<512x128xbf16, #tpu.memory_space<vmem>>, vector<512x128xbf16>
    %cst_41 = arith.constant dense<0.000000e+00> : vector<8x128xf32>
    %84 = tpu.matmul %82, %83, %cst_41 {dimension_numbers = #tpu.dot_dimension_numbers<[1], [0], [0], [1], [0, 0, 1, 1], [], []>} : vector<8x512xbf16>, vector<512x128xbf16>, vector<8x128xf32> -> vector<8x128xf32>
    %c0_42 = arith.constant 0 : index
    %c0_43 = arith.constant 0 : index
    %85 = vector.load %arg16[%c0_42, %c0_43] : memref<1x128xf32, #tpu.memory_space<vmem>>, vector<1x128xf32>
    %86 = vector.broadcast %85 : vector<1x128xf32> to vector<8x128xf32>
    %87 = arith.addf %84, %86 : vector<8x128xf32>
    %c0_44 = arith.constant 0 : index
    %c0_45 = arith.constant 0 : index
    %88 = vector.load %arg17[%c0_44, %c0_45] : memref<8x128xf32, #tpu.memory_space<vmem>>, vector<8x128xf32>
    tpu.vector_store %arg17[%c0_44, %c0_45], %87 {strides = array<i32>} : memref<8x128xf32, #tpu.memory_space<vmem>>, vector<8x128xf32>,
    return
  }
  func.func @transform_0(%arg0: i32) -> (i32, i32) {
    %c0_i32 = arith.constant 0 : i32
    %c0_i32_0 = arith.constant 0 : i32
    return %arg0, %c0_i32 : i32, i32
  }
  func.func @transform_1(%arg0: i32) -> (i32, i32) {
    %c0_i32 = arith.constant 0 : i32
    %c0_i32_0 = arith.constant 0 : i32
    return %arg0, %c0_i32 : i32, i32
  }
  func.func @transform_2(%arg0: i32) -> (i32, i32) {
    %c0_i32 = arith.constant 0 : i32
    %c0_i32_0 = arith.constant 0 : i32
    %c0_i32_1 = arith.constant 0 : i32
    return %c0_i32, %c0_i32_0 : i32, i32
  }
  func.func @transform_3(%arg0: i32) -> (i32, i32) {
    %c0_i32 = arith.constant 0 : i32
    %c0_i32_0 = arith.constant 0 : i32
    %c0_i32_1 = arith.constant 0 : i32
    return %c0_i32, %c0_i32_0 : i32, i32
  }
  func.func @transform_4(%arg0: i32) -> (i32, i32) {
    %c0_i32 = arith.constant 0 : i32
    %c0_i32_0 = arith.constant 0 : i32
    %c0_i32_1 = arith.constant 0 : i32
    return %c0_i32, %c0_i32_0 : i32, i32
  }
  func.func @transform_5(%arg0: i32) -> (i32, i32) {
    %c0_i32 = arith.constant 0 : i32
    %c0_i32_0 = arith.constant 0 : i32
    %c0_i32_1 = arith.constant 0 : i32
    return %c0_i32, %c0_i32_0 : i32, i32
  }
  func.func @transform_6(%arg0: i32) -> (i32, i32) {
    %c0_i32 = arith.constant 0 : i32
    %c0_i32_0 = arith.constant 0 : i32
    %c0_i32_1 = arith.constant 0 : i32
    return %c0_i32, %c0_i32_0 : i32, i32
  }
  func.func @transform_7(%arg0: i32) -> (i32, i32) {
    %c0_i32 = arith.constant 0 : i32
    %c0_i32_0 = arith.constant 0 : i32
    %c0_i32_1 = arith.constant 0 : i32
    return %c0_i32, %c0_i32_0 : i32, i32
  }
  func.func @transform_8(%arg0: i32) -> (i32, i32) {
    %c0_i32 = arith.constant 0 : i32
    %c0_i32_0 = arith.constant 0 : i32
    %c0_i32_1 = arith.constant 0 : i32
    return %c0_i32, %c0_i32_0 : i32, i32
  }
  func.func @transform_9(%arg0: i32) -> (i32, i32) {
    %c0_i32 = arith.constant 0 : i32
    %c0_i32_0 = arith.constant 0 : i32
    %c0_i32_1 = arith.constant 0 : i32
    return %c0_i32, %c0_i32_0 : i32, i32
  }
  func.func @transform_10(%arg0: i32) -> (i32, i32) {
    %c0_i32 = arith.constant 0 : i32
    %c0_i32_0 = arith.constant 0 : i32
    %c0_i32_1 = arith.constant 0 : i32
    return %c0_i32, %c0_i32_0 : i32, i32
  }
  func.func @transform_11(%arg0: i32) -> (i32, i32) {
    %c0_i32 = arith.constant 0 : i32
    %c0_i32_0 = arith.constant 0 : i32
    %c0_i32_1 = arith.constant 0 : i32
    return %c0_i32, %c0_i32_0 : i32, i32
  }
  func.func @transform_12(%arg0: i32) -> (i32, i32) {
    %c0_i32 = arith.constant 0 : i32
    %c0_i32_0 = arith.constant 0 : i32
    %c0_i32_1 = arith.constant 0 : i32
    return %c0_i32, %c0_i32_0 : i32, i32
  }
  func.func @transform_13(%arg0: i32) -> (i32, i32) {
    %c0_i32 = arith.constant 0 : i32
    %c0_i32_0 = arith.constant 0 : i32
    %c0_i32_1 = arith.constant 0 : i32
    return %c0_i32, %c0_i32_0 : i32, i32
  }
  func.func @transform_14(%arg0: i32) -> (i32, i32) {
    %c0_i32 = arith.constant 0 : i32
    %c0_i32_0 = arith.constant 0 : i32
    %c0_i32_1 = arith.constant 0 : i32
    return %c0_i32, %c0_i32_0 : i32, i32
  }
  func.func @transform_15(%arg0: i32) -> (i32, i32) {
    %c0_i32 = arith.constant 0 : i32
    %c0_i32_0 = arith.constant 0 : i32
    %c0_i32_1 = arith.constant 0 : i32
    return %c0_i32, %c0_i32_0 : i32, i32
  }
  func.func @transform_16(%arg0: i32) -> (i32, i32) {
    %c0_i32 = arith.constant 0 : i32
    %c0_i32_0 = arith.constant 0 : i32
    return %arg0, %c0_i32 : i32, i32
  }
}

</mosaic_0001>

<llo_original>
// kernel: diff_ik_denoiser.1
$region0: #{diff_ik_denoiser.1}
  #allocation0 [shape = 'u32[]', space=smem, size = 0x4, offset = 0x4, fixed_abs, tag = 'smem constant byte address 0x4 - core index']
  #allocation1 [shape = 'u32[144,128]{1,0:T(1,128)}', space=vmem, size = 0x12000, scoped, tag = 'internal scratch']
  %s0 = inlined_call_operand.vmem [shape: f32[8,64], index: 0, kind: input, shape index: {}]
  %s1 = inlined_call_operand.vmem [shape: f32[8,1], index: 1, kind: input, shape index: {}]
  %s2 = inlined_call_operand.vmem [shape: f32[1,64], index: 2, kind: input, shape index: {}]
  %s3 = inlined_call_operand.vmem [shape: f32[1,64], index: 3, kind: input, shape index: {}]
  %s4 = inlined_call_operand.vmem [shape: bf16[64,64], index: 4, kind: input, shape index: {}]
  %s5 = inlined_call_operand.vmem [shape: f32[1,64], index: 5, kind: input, shape index: {}]
  %s6 = inlined_call_operand.vmem [shape: f32[1,128], index: 6, kind: input, shape index: {}]
  %s7 = inlined_call_operand.vmem [shape: f32[1,128], index: 7, kind: input, shape index: {}]
  %s8 = inlined_call_operand.hbm [shape: bf16[128,512], index: 8, kind: input, shape index: {}]
  %s9 = inlined_call_operand.vmem [shape: f32[1,512], index: 9, kind: input, shape index: {}]
  %s10 = inlined_call_operand.hbm [shape: bf16[512,512], index: 10, kind: input, shape index: {}]
  %s11 = inlined_call_operand.vmem [shape: f32[1,512], index: 11, kind: input, shape index: {}]
  %s12 = inlined_call_operand.hbm [shape: bf16[512,512], index: 12, kind: input, shape index: {}]
  %s13 = inlined_call_operand.vmem [shape: f32[1,512], index: 13, kind: input, shape index: {}]
  %s14 = inlined_call_operand.hbm [shape: bf16[512,128], index: 14, kind: input, shape index: {}]
  %s15 = inlined_call_operand.vmem [shape: f32[1,128], index: 15, kind: input, shape index: {}]
  %s16 = inlined_call_operand.hbm [shape: f32[8,128], index: 16, kind: output, shape index: {}]
  %s17 = sld [smem:[#allocation0]]
  $region90: #{diff_ik_denoiser.1} parent=0
    _
  %s19 = ssub.s32 1, %s17
  %s20 = scalar_select 0, %s19, %s17
  $region1: #{diff_ik_denoiser.1} parent=0
    #allocation2 [shape = 'u8[131072]{0}', space=vmem, size = 0x20000, scoped, tag = 'input window, operand 8, single buffered']
    #allocation3 [shape = 's32[1]{0}', space=sflag, size = 0x4, scoped, tag = 'scoped memory for diff_ik_denoiser.1']
    #allocation4 [shape = 's32[1]{0}', space=sflag, size = 0x4, scoped, tag = 'scoped memory for diff_ik_denoiser.1']
    #allocation5 [shape = 'u8[524288]{0}', space=vmem, size = 0x80000, scoped, tag = 'input window, operand 10, single buffered']
    #allocation6 [shape = 's32[1]{0}', space=sflag, size = 0x4, scoped, tag = 'scoped memory for diff_ik_denoiser.1']
    #allocation7 [shape = 'u8[524288]{0}', space=vmem, size = 0x80000, scoped, tag = 'input window, operand 12, single buffered']
    #allocation8 [shape = 'u8[131072]{0}', space=vmem, size = 0x20000, scoped, tag = 'input window, operand 14, single buffered']
    #allocation9 [shape = 's32[1]{0}', space=sflag, size = 0x4, scoped, tag = 'scoped memory for diff_ik_denoiser.1']
    #allocation10 [shape = 'u8[4096]{0}', space=vmem, size = 0x1000, scoped, tag = 'output window, operand 0, single buffered']
    %21 = vsyncpa [#allocation3], 0
    %22 = vsyncpa [#allocation6], 0
    %23 = vsyncpa [#allocation9], 0
    %24 = vsyncpa [#allocation4], 0
    // Predicated region
    $region2: #{diff_ik_denoiser.1} parent=1 // pred_check
      _
    $region3: #{diff_ik_denoiser.1} parent=1 // pred_check_branch
      %26 = sbr.rel (0) target = $region5
    $region4: #{diff_ik_denoiser.1} parent=1 // pred_region
      _
    $region5: #{diff_ik_denoiser.1} parent=1 // pred_fallthru
      _
    // Predicated region
    $region6: #{diff_ik_denoiser.1} parent=1 // pred_check
      _
    $region7: #{diff_ik_denoiser.1} parent=1 // pred_check_branch
      %28 = sbr.rel (0) target = $region9
    $region8: #{diff_ik_denoiser.1} parent=1 // pred_region
      _
    $region9: #{diff_ik_denoiser.1} parent=1 // pred_fallthru
      _
    // Predicated region
    $region10: #{diff_ik_denoiser.1} parent=1 // pred_check
      _
    $region11: #{diff_ik_denoiser.1} parent=1 // pred_check_branch
      %30 = sbr.rel (0) target = $region13
    $region12: #{diff_ik_denoiser.1} parent=1 // pred_region
      _
    $region13: #{diff_ik_denoiser.1} parent=1 // pred_fallthru
      _
    // Predicated region
    $region14: #{diff_ik_denoiser.1} parent=1 // pred_check
      _
    $region15: #{diff_ik_denoiser.1} parent=1 // pred_check_branch
      %32 = sbr.rel (0) target = $region17
    $region16: #{diff_ik_denoiser.1} parent=1 // pred_region
      _
    $region17: #{diff_ik_denoiser.1} parent=1 // pred_fallthru
      _
    // Predicated region
    $region18: #{diff_ik_denoiser.1} parent=1 // pred_check
      _
    $region19: #{diff_ik_denoiser.1} parent=1 // pred_check_branch
      %34 = sbr.rel (0) target = $region21
    $region20: #{diff_ik_denoiser.1} parent=1 // pred_region
      _
    $region21: #{diff_ik_denoiser.1} parent=1 // pred_fallthru
      _
    // Predicated region
    $region22: #{diff_ik_denoiser.1} parent=1 // pred_check
      _
    $region23: #{diff_ik_denoiser.1} parent=1 // pred_check_branch
      %36 = sbr.rel (0) target = $region25
    $region24: #{diff_ik_denoiser.1} parent=1 // pred_region
      _
    $region25: #{diff_ik_denoiser.1} parent=1 // pred_fallthru
      _
    // Predicated region
    $region26: #{diff_ik_denoiser.1} parent=1 // pred_check
      _
    $region27: #{diff_ik_denoiser.1} parent=1 // pred_check_branch
      %38 = sbr.rel (0) target = $region29
    $region28: #{diff_ik_denoiser.1} parent=1 // pred_region
      _
    $region29: #{diff_ik_denoiser.1} parent=1 // pred_fallthru
      _
    // Predicated region
    $region30: #{diff_ik_denoiser.1} parent=1 // pred_check
      _
    $region31: #{diff_ik_denoiser.1} parent=1 // pred_check_branch
      %40 = sbr.rel (0) target = $region33
    $region32: #{diff_ik_denoiser.1} parent=1 // pred_region
      _
    $region33: #{diff_ik_denoiser.1} parent=1 // pred_fallthru
      _
    // Predicated region
    $region34: #{diff_ik_denoiser.1} parent=1 // pred_check
      _
    $region35: #{diff_ik_denoiser.1} parent=1 // pred_check_branch
      %42 = sbr.rel (0) target = $region37
    $region36: #{diff_ik_denoiser.1} parent=1 // pred_region
      %s44 = ssub.s32 4096, 4096
      %45 = vsyncadd [#allocation3], %s44
      %s46 = sshll.u32 [#allocation2], 4
      %s47 = int_to_ptr.vmem [resolvable:$true] %s46
      %52 = dma.hbm_to_vmem [thread:$0]  %s8, 4096, %s47, [#allocation3], 256, 256, 16
    $region37: #{diff_ik_denoiser.1} parent=1 // pred_fallthru
      _
    // Predicated region
    $region38: #{diff_ik_denoiser.1} parent=1 // pred_check
      _
    $region39: #{diff_ik_denoiser.1} parent=1 // pred_check_branch
      %54 = sbr.rel (0) target = $region41
    $region40: #{diff_ik_denoiser.1} parent=1 // pred_region
      _
    $region41: #{diff_ik_denoiser.1} parent=1 // pred_fallthru
      _
    // Predicated region
    $region42: #{diff_ik_denoiser.1} parent=1 // pred_check
      _
    $region43: #{diff_ik_denoiser.1} parent=1 // pred_check_branch
      %56 = sbr.rel (0) target = $region45
    $region44: #{diff_ik_denoiser.1} parent=1 // pred_region
      %s58 = ssub.s32 16384, 16384
      %59 = vsyncadd [#allocation6], %s58
      %s60 = sshll.u32 [#allocation5], 4
      %s61 = int_to_ptr.vmem [resolvable:$true] %s60
      %66 = dma.hbm_to_vmem [thread:$0]  %s10, 16384, %s61, [#allocation6], 256, 256, 16
    $region45: #{diff_ik_denoiser.1} parent=1 // pred_fallthru
      _
    // Predicated region
    $region46: #{diff_ik_denoiser.1} parent=1 // pred_check
      _
    $region47: #{diff_ik_denoiser.1} parent=1 // pred_check_branch
      %68 = sbr.rel (0) target = $region49
    $region48: #{diff_ik_denoiser.1} parent=1 // pred_region
      _
    $region49: #{diff_ik_denoiser.1} parent=1 // pred_fallthru
      _
    // Predicated region
    $region50: #{diff_ik_denoiser.1} parent=1 // pred_check
      _
    $region51: #{diff_ik_denoiser.1} parent=1 // pred_check_branch
      %70 = sbr.rel (0) target = $region53
    $region52: #{diff_ik_denoiser.1} parent=1 // pred_region
      %s72 = ssub.s32 16384, 16384
      %73 = vsyncadd [#allocation6], %s72
      %s74 = sshll.u32 [#allocation7], 4
      %s75 = int_to_ptr.vmem [resolvable:$true] %s74
      %80 = dma.hbm_to_vmem [thread:$0]  %s12, 16384, %s75, [#allocation6], 256, 256, 16
    $region53: #{diff_ik_denoiser.1} parent=1 // pred_fallthru
      _
    // Predicated region
    $region54: #{diff_ik_denoiser.1} parent=1 // pred_check
      _
    $region55: #{diff_ik_denoiser.1} parent=1 // pred_check_branch
      %82 = sbr.rel (0) target = $region57
    $region56: #{diff_ik_denoiser.1} parent=1 // pred_region
      _
    $region57: #{diff_ik_denoiser.1} parent=1 // pred_fallthru
      _
    // Predicated region
    $region58: #{diff_ik_denoiser.1} parent=1 // pred_check
      _
    $region59: #{diff_ik_denoiser.1} parent=1 // pred_check_branch
      %84 = sbr.rel (0) target = $region61
    $region60: #{diff_ik_denoiser.1} parent=1 // pred_region
      %s86 = ssub.s32 4096, 4096
      %87 = vsyncadd [#allocation9], %s86
      %s88 = sshll.u32 [#allocation8], 4
      %s89 = int_to_ptr.vmem [resolvable:$true] %s88
      %94 = dma.hbm_to_vmem [thread:$0]  %s14, 4096, %s89, [#allocation9], 64, 64, 4
    $region61: #{diff_ik_denoiser.1} parent=1 // pred_fallthru
      _
    // Predicated region
    $region62: #{diff_ik_denoiser.1} parent=1 // pred_check
      _
    $region63: #{diff_ik_denoiser.1} parent=1 // pred_check_branch
      %96 = sbr.rel (0) target = $region65
    $region64: #{diff_ik_denoiser.1} parent=1 // pred_region
      _
    $region65: #{diff_ik_denoiser.1} parent=1 // pred_fallthru
      _
    // Predicated region
    $region66: #{diff_ik_denoiser.1} parent=1 // pred_check
      _
    $region67: #{diff_ik_denoiser.1} parent=1 // pred_check_branch
      %98 = sbr.rel (0) target = $region69
    $region68: #{diff_ik_denoiser.1} parent=1 // pred_region
      %99 = dma.done [#allocation3], 4096
    $region69: #{diff_ik_denoiser.1} parent=1 // pred_fallthru
      _
    // Predicated region
    $region70: #{diff_ik_denoiser.1} parent=1 // pred_check
      _
    $region71: #{diff_ik_denoiser.1} parent=1 // pred_check_branch
      %101 = sbr.rel (0) target = $region73
    $region72: #{diff_ik_denoiser.1} parent=1 // pred_region
      %102 = dma.done [#allocation6], 16384
    $region73: #{diff_ik_denoiser.1} parent=1 // pred_fallthru
      _
    // Predicated region
    $region74: #{diff_ik_denoiser.1} parent=1 // pred_check
      _
    $region75: #{diff_ik_denoiser.1} parent=1 // pred_check_branch
      %104 = sbr.rel (0) target = $region77
    $region76: #{diff_ik_denoiser.1} parent=1 // pred_region
      %105 = dma.done [#allocation6], 16384
    $region77: #{diff_ik_denoiser.1} parent=1 // pred_fallthru
      _
    // Predicated region
    $region78: #{diff_ik_denoiser.1} parent=1 // pred_check
      _
    $region79: #{diff_ik_denoiser.1} parent=1 // pred_check_branch
      %107 = sbr.rel (0) target = $region81
    $region80: #{diff_ik_denoiser.1} parent=1 // pred_region
      %108 = dma.done [#allocation9], 4096
    $region81: #{diff_ik_denoiser.1} parent=1 // pred_fallthru
      _
    %v110 = vld [vmem:[%s1] sm:$0xff]
    %v111 = vld [vmem:[%s2] sm:$0x1]
    %113 = vset.pattern.permute.xlu0 0
    %114 = vperm.xlu0 %113, %v110
    %v115 = vpop.permute.xlu0 %114
    %v118 = vlaneseq
    %v119 = vshrl.u32 %v118, 7
    %v120 = vsub.s32 0, %v119
    %v121 = vrot.slane %v111, %v120
    %v123 = vmul.f32 %v115, %v121
    %v124 = vld [vmem:[%s3] sm:$0x1]
    %v126 = vlaneseq
    %v127 = vshrl.u32 %v126, 7
    %v128 = vsub.s32 0, %v127
    %v129 = vrot.slane %v124, %v128
    %v131 = vadd.f32 %v123, %v129
    %v132 = vxor.u32 %v131, 2147483648
    %v133 = vmul.f32 %v132, 1.442695
    %v134 = vpow.pop %v133
    %v135 = vadd.f32 %v134, 1.0
    %v136 = vrcp.pop %v135
    %v137 = vmul.f32 1.0, %v136
    %v138 = vmul.f32 %v131, %v137
    %v139 = vpack.c.bf16 %v138, %v138
    %v140 = vld [vmem:[%s4] sm:$0xf]
    %v141 = vld [vmem:[%s4 + $0x4] sm:$0xf]
    %v142 = vld [vmem:[%s4 + $0x8] sm:$0xf]
    %v143 = vld [vmem:[%s4 + $0xc] sm:$0xf]
    %v144 = vld [vmem:[%s4 + $0x10] sm:$0xf]
    %v145 = vld [vmem:[%s4 + $0x14] sm:$0xf]
    %v146 = vld [vmem:[%s4 + $0x18] sm:$0xf]
    %v147 = vld [vmem:[%s4 + $0x1c] sm:$0xf]
    %v148 = vld [vmem:[%s5] sm:$0x1]
    %v150 = vlaneseq
    %v151 = vshrl.u32 %v150, 7
    %v152 = vsub.s32 0, %v151
    %v153 = vrot.slane %v148, %v152
    %v163 = vunpack.c.l.b16 %v140
    %v164 = vunpack.c.l.b16 %v141
    %v165 = vunpack.c.l.b16 %v142
    %v166 = vunpack.c.l.b16 %v143
    %v167 = vunpack.c.l.b16 %v144
    %v168 = vunpack.c.l.b16 %v145
    %v169 = vunpack.c.l.b16 %v146
    %v170 = vunpack.c.l.b16 %v147
    %v171 = vpack.c.b16 %v164, %v163
    %v172 = vpack.c.b16 %v166, %v165
    %v173 = vpack.c.b16 %v168, %v167
    %v174 = vpack.c.b16 %v170, %v169
    %vm179 = vcmask 523264
    %v181 = vsel %vm179, %v139, 0
    %183 = vmatprep.subr.bf16.mxu0 0
    %184 = vmatpush1.bf16.msra.mxu0 0
    %185 = vmatprep.subr.bf16.mxu0 0
    %186 = vmatpush1.bf16.msra.mxu0 0
    %187 = vmatprep.subr.bf16.mxu0 0
    %188 = vmatpush1.bf16.msra.mxu0 0
    %189 = vmatprep.subr.bf16.mxu0 0
    %190 = vmatpush1.bf16.msra.mxu0 0
    %191 = vmatprep.subr.bf16.mxu0 0
    %192 = vmatpush1.bf16.msra.mxu0 %v174
    %193 = vmatprep.subr.bf16.mxu0 0
    %194 = vmatpush1.bf16.msra.mxu0 %v173
    %195 = vmatprep.subr.bf16.mxu0 0
    %196 = vmatpush1.bf16.msra.mxu0 %v172
    %197 = vmatprep.subr.bf16.mxu0 0
    %198 = vmatpush1.bf16.msra.mxu0 %v171
    %199 = vmatprep.subr.bf16.mxu0 0
    %200 = vmatpush2.bf16.msra.mxu0 0
    %201 = vmatprep.subr.bf16.mxu0 0
    %202 = vmatpush2.bf16.msra.mxu0 0
    %203 = vmatprep.subr.bf16.mxu0 0
    %204 = vmatpush2.bf16.msra.mxu0 0
    %205 = vmatprep.subr.bf16.mxu0 0
    %206 = vmatpush2.bf16.msra.mxu0 0
    %207 = vmatprep.subr.bf16.mxu0 0
    %208 = vmatpush2.bf16.msra.mxu0 0
    %209 = vmatprep.subr.bf16.mxu0 0
    %210 = vmatpush2.bf16.msra.mxu0 0
    %211 = vmatprep.subr.bf16.mxu0 0
    %212 = vmatpush2.bf16.msra.mxu0 0
    %213 = vmatprep.subr.bf16.mxu0 0
    %214 = vmatpush2.bf16.msra.mxu0 0
    %215 = vmatprep.mubr.bf16.mxu0 0
    %216 = vmatmul.mubr.bf16.gmra.mxu0 %v181
    %v217 = vpop.f32.mrf.mxu0
    %v218 = vadd.f32 %v153, %v217
    %v219 = vpop.f32.mrf.mxu0
    %v220 = vpop.f32.mrf.mxu0
    %v221 = vpop.f32.mrf.mxu0
    %222 = vdwg.mxu0
    %v223 = vld [vmem:[%s0] sm:$0xff]
    %225 = vrot.lane.b32.xlu0 %v218, 64
    %v226 = vpop.permute.xlu0 %225
    %v228 = vsel %vm179, %v223, %v226
    %229 = vadd.xlane.f32.xlu0 %v228
    %v230 = vpop.xlane.xlu0 %229
    %v231 = vmul.f32 %v228, %v228
    %232 = vadd.xlane.f32.xlu0 %v231
    %v233 = vpop.xlane.xlu0 %232
    %v234 = vrcp.pop 78.0
    %v235 = vmul.f32 %v230, %v234
    %v236 = vmul.f32 %v233, %v234
    %v237 = vmul.f32 %v235, %v235
    %v238 = vsub.f32 %v236, %v237
    %v239 = vadd.f32 %v238, 1e-05
    %v240 = vrsqrt.pop %v239
    %v241 = vsub.f32 %v228, %v235
    %v242 = vmul.f32 %v241, %v240
    %v243 = vld [vmem:[%s6] sm:$0x1]
    %v245 = vlaneseq
    %v246 = vshrl.u32 %v245, 7
    %v247 = vsub.s32 0, %v246
    %v248 = vrot.slane %v243, %v247
    %v250 = vmul.f32 %v242, %v248
    %v251 = vld [vmem:[%s7] sm:$0x1]
    %v253 = vlaneseq
    %v254 = vshrl.u32 %v253, 7
    %v255 = vsub.s32 0, %v254
    %v256 = vrot.slane %v251, %v255
    %v258 = vadd.f32 %v250, %v256
    %v259 = vpack.c.bf16 %v258, %v258
    %v260 = vld [vmem:[#allocation2] sm:$0xff]
    %v261 = vld [vmem:[#allocation2 + $0x8] sm:$0xff]
    %v262 = vld [vmem:[#allocation2 + $0x10] sm:$0xff]
    %v263 = vld [vmem:[#allocation2 + $0x18] sm:$0xff]
    %v264 = vld [vmem:[#allocation2 + $0x20] sm:$0xff]
    %v265 = vld [vmem:[#allocation2 + $0x28] sm:$0xff]
    %v266 = vld [vmem:[#allocation2 + $0x30] sm:$0xff]
    %v267 = vld [vmem:[#allocation2 + $0x38] sm:$0xff]
    %v268 = vld [vmem:[#allocation2 + $0x40] sm:$0xff]
    %v269 = vld [vmem:[#allocation2 + $0x48] sm:$0xff]
    %v270 = vld [vmem:[#allocation2 + $0x50] sm:$0xff]
    %v271 = vld [vmem:[#allocation2 + $0x58] sm:$0xff]
    %v272 = vld [vmem:[#allocation2 + $0x60] sm:$0xff]
    %v273 = vld [vmem:[#allocation2 + $0x68] sm:$0xff]
    %v274 = vld [vmem:[#allocation2 + $0x70] sm:$0xff]
    %v275 = vld [vmem:[#allocation2 + $0x78] sm:$0xff]
    %v276 = vld [vmem:[#allocation2 + $0x80] sm:$0xff]
    %v277 = vld [vmem:[#allocation2 + $0x88] sm:$0xff]
    %v278 = vld [vmem:[#allocation2 + $0x90] sm:$0xff]
    %v279 = vld [vmem:[#allocation2 + $0x98] sm:$0xff]
    %v280 = vld [vmem:[#allocation2 + $0xa0] sm:$0xff]
    %v281 = vld [vmem:[#allocation2 + $0xa8] sm:$0xff]
    %v282 = vld [vmem:[#allocation2 + $0xb0] sm:$0xff]
    %v283 = vld [vmem:[#allocation2 + $0xb8] sm:$0xff]
    %v284 = vld [vmem:[#allocation2 + $0xc0] sm:$0xff]
    %v285 = vld [vmem:[#allocation2 + $0xc8] sm:$0xff]
    %v286 = vld [vmem:[#allocation2 + $0xd0] sm:$0xff]
    %v287 = vld [vmem:[#allocation2 + $0xd8] sm:$0xff]
    %v288 = vld [vmem:[#allocation2 + $0xe0] sm:$0xff]
    %v289 = vld [vmem:[#allocation2 + $0xe8] sm:$0xff]
    %v290 = vld [vmem:[#allocation2 + $0xf0] sm:$0xff]
    %v291 = vld [vmem:[#allocation2 + $0xf8] sm:$0xff]
    %v292 = vld [vmem:[%s9] sm:$0xf]
    %v294 = vlaneseq
    %v295 = vshrl.u32 %v294, 7
    %v296 = vsub.s32 0, %v295
    %v297 = vrot.slane %v292, %v296
    %v298 = vlaneseq
    %v299 = vshrl.u32 %v298, 7
    %v300 = vsub.s32 1, %v299
    %v301 = vrot.slane %v292, %v300
    %v302 = vlaneseq
    %v303 = vshrl.u32 %v302, 7
    %v304 = vsub.s32 2, %v303
    %v305 = vrot.slane %v292, %v304
    %v306 = vlaneseq
    %v307 = vshrl.u32 %v306, 7
    %v308 = vsub.s32 3, %v307
    %v309 = vrot.slane %v292, %v308
    %v346 = vunpack.c.l.b16 %v260
    %v347 = vunpack.c.h.b16 %v260
    %v348 = vunpack.c.l.b16 %v261
    %v349 = vunpack.c.h.b16 %v261
    %v350 = vunpack.c.l.b16 %v262
    %v351 = vunpack.c.h.b16 %v262
    %v352 = vunpack.c.l.b16 %v263
    %v353 = vunpack.c.h.b16 %v263
    %v354 = vunpack.c.l.b16 %v264
    %v355 = vunpack.c.h.b16 %v264
    %v356 = vunpack.c.l.b16 %v265
    %v357 = vunpack.c.h.b16 %v265
    %v358 = vunpack.c.l.b16 %v266
    %v359 = vunpack.c.h.b16 %v266
    %v360 = vunpack.c.l.b16 %v267
    %v361 = vunpack.c.h.b16 %v267
    %v362 = vunpack.c.l.b16 %v268
    %v363 = vunpack.c.h.b16 %v268
    %v364 = vunpack.c.l.b16 %v269
    %v365 = vunpack.c.h.b16 %v269
    %v366 = vunpack.c.l.b16 %v270
    %v367 = vunpack.c.h.b16 %v270
    %v368 = vunpack.c.l.b16 %v271
    %v369 = vunpack.c.h.b16 %v271
    %v370 = vunpack.c.l.b16 %v272
    %v371 = vunpack.c.h.b16 %v272
    %v372 = vunpack.c.l.b16 %v273
    %v373 = vunpack.c.h.b16 %v273
    %v374 = vunpack.c.l.b16 %v274
    %v375 = vunpack.c.h.b16 %v274
    %v376 = vunpack.c.l.b16 %v275
    %v377 = vunpack.c.h.b16 %v275
    %v378 = vunpack.c.l.b16 %v276
    %v379 = vunpack.c.h.b16 %v276
    %v380 = vunpack.c.l.b16 %v277
    %v381 = vunpack.c.h.b16 %v277
    %v382 = vunpack.c.l.b16 %v278
    %v383 = vunpack.c.h.b16 %v278
    %v384 = vunpack.c.l.b16 %v279
    %v385 = vunpack.c.h.b16 %v279
    %v386 = vunpack.c.l.b16 %v280
    %v387 = vunpack.c.h.b16 %v280
    %v388 = vunpack.c.l.b16 %v281
    %v389 = vunpack.c.h.b16 %v281
    %v390 = vunpack.c.l.b16 %v282
    %v391 = vunpack.c.h.b16 %v282
    %v392 = vunpack.c.l.b16 %v283
    %v393 = vunpack.c.h.b16 %v283
    %v394 = vunpack.c.l.b16 %v284
    %v395 = vunpack.c.h.b16 %v284
    %v396 = vunpack.c.l.b16 %v285
    %v397 = vunpack.c.h.b16 %v285
    %v398 = vunpack.c.l.b16 %v286
    %v399 = vunpack.c.h.b16 %v286
    %v400 = vunpack.c.l.b16 %v287
    %v401 = vunpack.c.h.b16 %v287
    %v402 = vunpack.c.l.b16 %v288
    %v403 = vunpack.c.h.b16 %v288
    %v404 = vunpack.c.l.b16 %v289
    %v405 = vunpack.c.h.b16 %v289
    %v406 = vunpack.c.l.b16 %v290
    %v407 = vunpack.c.h.b16 %v290
    %v408 = vunpack.c.l.b16 %v291
    %v409 = vunpack.c.h.b16 %v291
    %v410 = vpack.c.b16 %v350, %v346
    %v411 = vpack.c.b16 %v351, %v347
    %v412 = vpack.c.b16 %v352, %v348
    %v413 = vpack.c.b16 %v353, %v349
    %v414 = vpack.c.b16 %v358, %v354
    %v415 = vpack.c.b16 %v359, %v355
    %v416 = vpack.c.b16 %v360, %v356
    %v417 = vpack.c.b16 %v361, %v357
    %v418 = vpack.c.b16 %v366, %v362
    %v419 = vpack.c.b16 %v367, %v363
    %v420 = vpack.c.b16 %v368, %v364
    %v421 = vpack.c.b16 %v369, %v365
    %v422 = vpack.c.b16 %v374, %v370
    %v423 = vpack.c.b16 %v375, %v371
    %v424 = vpack.c.b16 %v376, %v372
    %v425 = vpack.c.b16 %v377, %v373
    %v426 = vpack.c.b16 %v382, %v378
    %v427 = vpack.c.b16 %v383, %v379
    %v428 = vpack.c.b16 %v384, %v380
    %v429 = vpack.c.b16 %v385, %v381
    %v430 = vpack.c.b16 %v390, %v386
    %v431 = vpack.c.b16 %v391, %v387
    %v432 = vpack.c.b16 %v392, %v388
    %v433 = vpack.c.b16 %v393, %v389
    %v434 = vpack.c.b16 %v398, %v394
    %v435 = vpack.c.b16 %v399, %v395
    %v436 = vpack.c.b16 %v400, %v396
    %v437 = vpack.c.b16 %v401, %v397
    %v438 = vpack.c.b16 %v406, %v402
    %v439 = vpack.c.b16 %v407, %v403
    %v440 = vpack.c.b16 %v408, %v404
    %v441 = vpack.c.b16 %v409, %v405
    %474 = vmatprep.subr.bf16.mxu0 %v439
    %475 = vmatpush1.bf16.msra.mxu0 %v438
    %476 = vmatprep.subr.bf16.mxu0 %v435
    %477 = vmatpush1.bf16.msra.mxu0 %v434
    %478 = vmatprep.subr.bf16.mxu0 %v431
    %479 = vmatpush1.bf16.msra.mxu0 %v430
    %480 = vmatprep.subr.bf16.mxu0 %v427
    %481 = vmatpush1.bf16.msra.mxu0 %v426
    %482 = vmatprep.subr.bf16.mxu0 %v423
    %483 = vmatpush1.bf16.msra.mxu0 %v422
    %484 = vmatprep.subr.bf16.mxu0 %v419
    %485 = vmatpush1.bf16.msra.mxu0 %v418
    %486 = vmatprep.subr.bf16.mxu0 %v415
    %487 = vmatpush1.bf16.msra.mxu0 %v414
    %488 = vmatprep.subr.bf16.mxu0 %v411
    %489 = vmatpush1.bf16.msra.mxu0 %v410
    %490 = vmatprep.subr.bf16.mxu0 0
    %491 = vmatpush2.bf16.msra.mxu0 0
    %492 = vmatprep.subr.bf16.mxu0 0
    %493 = vmatpush2.bf16.msra.mxu0 0
    %494 = vmatprep.subr.bf16.mxu0 0
    %495 = vmatpush2.bf16.msra.mxu0 0
    %496 = vmatprep.subr.bf16.mxu0 0
    %497 = vmatpush2.bf16.msra.mxu0 0
    %498 = vmatprep.subr.bf16.mxu0 0
    %499 = vmatpush2.bf16.msra.mxu0 0
    %500 = vmatprep.subr.bf16.mxu0 0
    %501 = vmatpush2.bf16.msra.mxu0 0
    %502 = vmatprep.subr.bf16.mxu0 0
    %503 = vmatpush2.bf16.msra.mxu0 0
    %504 = vmatprep.subr.bf16.mxu0 0
    %505 = vmatpush2.bf16.msra.mxu0 0
    %506 = vmatprep.mubr.bf16.mxu0 0
    %507 = vmatmul.mubr.bf16.gmra.mxu0 %v259
    %v508 = vpop.f32.mrf.mxu0
    %v509 = vadd.f32 %v297, %v508
    %v510 = vpop.f32.mrf.mxu0
    %v511 = vadd.f32 %v301, %v510
    %v512 = vpop.f32.mrf.mxu0
    %v513 = vpop.f32.mrf.mxu0
    %514 = vdwg.mxu0
    %515 = vmatprep.subr.bf16.mxu0 %v441
    %516 = vmatpush1.bf16.msra.mxu0 %v440
    %517 = vmatprep.subr.bf16.mxu0 %v437
    %518 = vmatpush1.bf16.msra.mxu0 %v436
    %519 = vmatprep.subr.bf16.mxu0 %v433
    %520 = vmatpush1.bf16.msra.mxu0 %v432
    %521 = vmatprep.subr.bf16.mxu0 %v429
    %522 = vmatpush1.bf16.msra.mxu0 %v428
    %523 = vmatprep.subr.bf16.mxu0 %v425
    %524 = vmatpush1.bf16.msra.mxu0 %v424
    %525 = vmatprep.subr.bf16.mxu0 %v421
    %526 = vmatpush1.bf16.msra.mxu0 %v420
    %527 = vmatprep.subr.bf16.mxu0 %v417
    %528 = vmatpush1.bf16.msra.mxu0 %v416
    %529 = vmatprep.subr.bf16.mxu0 %v413
    %530 = vmatpush1.bf16.msra.mxu0 %v412
    %531 = vmatprep.subr.bf16.mxu0 0
    %532 = vmatpush2.bf16.msra.mxu0 0
    %533 = vmatprep.subr.bf16.mxu0 0
    %534 = vmatpush2.bf16.msra.mxu0 0
    %535 = vmatprep.subr.bf16.mxu0 0
    %536 = vmatpush2.bf16.msra.mxu0 0
    %537 = vmatprep.subr.bf16.mxu0 0
    %538 = vmatpush2.bf16.msra.mxu0 0
    %539 = vmatprep.subr.bf16.mxu0 0
    %540 = vmatpush2.bf16.msra.mxu0 0
    %541 = vmatprep.subr.bf16.mxu0 0
    %542 = vmatpush2.bf16.msra.mxu0 0
    %543 = vmatprep.subr.bf16.mxu0 0
    %544 = vmatpush2.bf16.msra.mxu0 0
    %545 = vmatprep.subr.bf16.mxu0 0
    %546 = vmatpush2.bf16.msra.mxu0 0
    %547 = vmatprep.mubr.bf16.mxu0 0
    %548 = vmatmul.mubr.bf16.gmra.mxu0 %v259
    %v549 = vpop.f32.mrf.mxu0
    %v550 = vadd.f32 %v305, %v549
    %v551 = vpop.f32.mrf.mxu0
    %v552 = vadd.f32 %v309, %v551
    %v553 = vpop.f32.mrf.mxu0
    %v554 = vpop.f32.mrf.mxu0
    %555 = vdwg.mxu0
    %v556 = vxor.u32 %v509, 2147483648
    %v557 = vxor.u32 %v511, 2147483648
    %v558 = vxor.u32 %v550, 2147483648
    %v559 = vxor.u32 %v552, 2147483648
    %v560 = vmul.f32 %v556, 1.442695
    %v561 = vpow.pop %v560
    %v562 = vmul.f32 %v557, 1.442695
    %v563 = vpow.pop %v562
    %v564 = vmul.f32 %v558, 1.442695
    %v565 = vpow.pop %v564
    %v566 = vmul.f32 %v559, 1.442695
    %v567 = vpow.pop %v566
    %v568 = vadd.f32 %v561, 1.0
    %v569 = vadd.f32 %v563, 1.0
    %v570 = vadd.f32 %v565, 1.0
    %v571 = vadd.f32 %v567, 1.0
    %v572 = vrcp.pop %v568
    %v573 = vmul.f32 1.0, %v572
    %v574 = vrcp.pop %v569
    %v575 = vmul.f32 1.0, %v574
    %v576 = vrcp.pop %v570
    %v577 = vmul.f32 1.0, %v576
    %v578 = vrcp.pop %v571
    %v579 = vmul.f32 1.0, %v578
    %v580 = vmul.f32 %v509, %v573
    %v581 = vmul.f32 %v511, %v575
    %v582 = vmul.f32 %v550, %v577
    %v583 = vmul.f32 %v552, %v579
    %v584 = vpack.c.bf16 %v580, %v580
    %v585 = vpack.c.bf16 %v581, %v581
    %v586 = vpack.c.bf16 %v582, %v582
    %v587 = vpack.c.bf16 %v583, %v583
    %v588 = vld [vmem:[#allocation5] sm:$0xff]
    %v589 = vld [vmem:[#allocation5 + $0x8] sm:$0xff]
    %v590 = vld [vmem:[#allocation5 + $0x10] sm:$0xff]
    %v591 = vld [vmem:[#allocation5 + $0x18] sm:$0xff]
    %v592 = vld [vmem:[#allocation5 + $0x20] sm:$0xff]
    %v593 = vld [vmem:[#allocation5 + $0x28] sm:$0xff]
    %v594 = vld [vmem:[#allocation5 + $0x30] sm:$0xff]
    %v595 = vld [vmem:[#allocation5 + $0x38] sm:$0xff]
    %v596 = vld [vmem:[#allocation5 + $0x40] sm:$0xff]
    %v597 = vld [vmem:[#allocation5 + $0x48] sm:$0xff]
    %v598 = vld [vmem:[#allocation5 + $0x50] sm:$0xff]
    %v599 = vld [vmem:[#allocation5 + $0x58] sm:$0xff]
    %v600 = vld [vmem:[#allocation5 + $0x60] sm:$0xff]
    %v601 = vld [vmem:[#allocation5 + $0x68] sm:$0xff]
    %v602 = vld [vmem:[#allocation5 + $0x70] sm:$0xff]
    %v603 = vld [vmem:[#allocation5 + $0x78] sm:$0xff]
    %v604 = vld [vmem:[#allocation5 + $0x80] sm:$0xff]
    %v605 = vld [vmem:[#allocation5 + $0x88] sm:$0xff]
    %v606 = vld [vmem:[#allocation5 + $0x90] sm:$0xff]
    %v607 = vld [vmem:[#allocation5 + $0x98] sm:$0xff]
    %v608 = vld [vmem:[#allocation5 + $0xa0] sm:$0xff]
    %v609 = vld [vmem:[#allocation5 + $0xa8] sm:$0xff]
    %v610 = vld [vmem:[#allocation5 + $0xb0] sm:$0xff]
    %v611 = vld [vmem:[#allocation5 + $0xb8] sm:$0xff]
    %v612 = vld [vmem:[#allocation5 + $0xc0] sm:$0xff]
    %v613 = vld [vmem:[#allocation5 + $0xc8] sm:$0xff]
    %v614 = vld [vmem:[#allocation5 + $0xd0] sm:$0xff]
    %v615 = vld [vmem:[#allocation5 + $0xd8] sm:$0xff]
    %v616 = vld [vmem:[#allocation5 + $0xe0] sm:$0xff]
    %v617 = vld [vmem:[#allocation5 + $0xe8] sm:$0xff]
    %v618 = vld [vmem:[#allocation5 + $0xf0] sm:$0xff]
    %v619 = vld [vmem:[#allocation5 + $0xf8] sm:$0xff]
    %v620 = vld [vmem:[#allocation5 + $0x100] sm:$0xff]
    %v621 = vld [vmem:[#allocation5 + $0x108] sm:$0xff]
    %v622 = vld [vmem:[#allocation5 + $0x110] sm:$0xff]
    %v623 = vld [vmem:[#allocation5 + $0x118] sm:$0xff]
    %v624 = vld [vmem:[#allocation5 + $0x120] sm:$0xff]
    %v625 = vld [vmem:[#allocation5 + $0x128] sm:$0xff]
    %v626 = vld [vmem:[#allocation5 + $0x130] sm:$0xff]
    %v627 = vld [vmem:[#allocation5 + $0x138] sm:$0xff]
    %v628 = vld [vmem:[#allocation5 + $0x140] sm:$0xff]
    %v629 = vld [vmem:[#allocation5 + $0x148] sm:$0xff]
    %v630 = vld [vmem:[#allocation5 + $0x150] sm:$0xff]
    %v631 = vld [vmem:[#allocation5 + $0x158] sm:$0xff]
    %v632 = vld [vmem:[#allocation5 + $0x160] sm:$0xff]
    %v633 = vld [vmem:[#allocation5 + $0x168] sm:$0xff]
    %v634 = vld [vmem:[#allocation5 + $0x170] sm:$0xff]
    %v635 = vld [vmem:[#allocation5 + $0x178] sm:$0xff]
    %v636 = vld [vmem:[#allocation5 + $0x180] sm:$0xff]
    %v637 = vld [vmem:[#allocation5 + $0x188] sm:$0xff]
    %v638 = vld [vmem:[#allocation5 + $0x190] sm:$0xff]
    %v639 = vld [vmem:[#allocation5 + $0x198] sm:$0xff]
    %v640 = vld [vmem:[#allocation5 + $0x1a0] sm:$0xff]
    %v641 = vld [vmem:[#allocation5 + $0x1a8] sm:$0xff]
    %v642 = vld [vmem:[#allocation5 + $0x1b0] sm:$0xff]
    %v643 = vld [vmem:[#allocation5 + $0x1b8] sm:$0xff]
    %v644 = vld [vmem:[#allocation5 + $0x1c0] sm:$0xff]
    %v645 = vld [vmem:[#allocation5 + $0x1c8] sm:$0xff]
    %v646 = vld [vmem:[#allocation5 + $0x1d0] sm:$0xff]
    %v647 = vld [vmem:[#allocation5 + $0x1d8] sm:$0xff]
    %v648 = vld [vmem:[#allocation5 + $0x1e0] sm:$0xff]
    %v649 = vld [vmem:[#allocation5 + $0x1e8] sm:$0xff]
    %v650 = vld [vmem:[#allocation5 + $0x1f0] sm:$0xff]
    %v651 = vld [vmem:[#allocation5 + $0x1f8] sm:$0xff]
    %v652 = vld [vmem:[#allocation5 + $0x200] sm:$0xff]
    %v653 = vld [vmem:[#allocation5 + $0x208] sm:$0xff]
    %v654 = vld [vmem:[#allocation5 + $0x210] sm:$0xff]
    %v655 = vld [vmem:[#allocation5 + $0x218] sm:$0xff]
    %v656 = vld [vmem:[#allocation5 + $0x220] sm:$0xff]
    %v657 = vld [vmem:[#allocation5 + $0x228] sm:$0xff]
    %v658 = vld [vmem:[#allocation5 + $0x230] sm:$0xff]
    %v659 = vld [vmem:[#allocation5 + $0x238] sm:$0xff]
    %v660 = vld [vmem:[#allocation5 + $0x240] sm:$0xff]
    %v661 = vld [vmem:[#allocation5 + $0x248] sm:$0xff]
    %v662 = vld [vmem:[#allocation5 + $0x250] sm:$0xff]
    %v663 = vld [vmem:[#allocation5 + $0x258] sm:$0xff]
    %v664 = vld [vmem:[#allocation5 + $0x260] sm:$0xff]
    %v665 = vld [vmem:[#allocation5 + $0x268] sm:$0xff]
    %v666 = vld [vmem:[#allocation5 + $0x270] sm:$0xff]
    %v667 = vld [vmem:[#allocation5 + $0x278] sm:$0xff]
    %v668 = vld [vmem:[#allocation5 + $0x280] sm:$0xff]
    %v669 = vld [vmem:[#allocation5 + $0x288] sm:$0xff]
    %v670 = vld [vmem:[#allocation5 + $0x290] sm:$0xff]
    %v671 = vld [vmem:[#allocation5 + $0x298] sm:$0xff]
    %v672 = vld [vmem:[#allocation5 + $0x2a0] sm:$0xff]
    %v673 = vld [vmem:[#allocation5 + $0x2a8] sm:$0xff]
    %v674 = vld [vmem:[#allocation5 + $0x2b0] sm:$0xff]
    %v675 = vld [vmem:[#allocation5 + $0x2b8] sm:$0xff]
    %v676 = vld [vmem:[#allocation5 + $0x2c0] sm:$0xff]
    %v677 = vld [vmem:[#allocation5 + $0x2c8] sm:$0xff]
    %v678 = vld [vmem:[#allocation5 + $0x2d0] sm:$0xff]
    %v679 = vld [vmem:[#allocation5 + $0x2d8] sm:$0xff]
    %v680 = vld [vmem:[#allocation5 + $0x2e0] sm:$0xff]
    %v681 = vld [vmem:[#allocation5 + $0x2e8] sm:$0xff]
    %v682 = vld [vmem:[#allocation5 + $0x2f0] sm:$0xff]
    %v683 = vld [vmem:[#allocation5 + $0x2f8] sm:$0xff]
    %v684 = vld [vmem:[#allocation5 + $0x300] sm:$0xff]
    %v685 = vld [vmem:[#allocation5 + $0x308] sm:$0xff]
    %v686 = vld [vmem:[#allocation5 + $0x310] sm:$0xff]
    %v687 = vld [vmem:[#allocation5 + $0x318] sm:$0xff]
    %v688 = vld [vmem:[#allocation5 + $0x320] sm:$0xff]
    %v689 = vld [vmem:[#allocation5 + $0x328] sm:$0xff]
    %v690 = vld [vmem:[#allocation5 + $0x330] sm:$0xff]
    %v691 = vld [vmem:[#allocation5 + $0x338] sm:$0xff]
    %v692 = vld [vmem:[#allocation5 + $0x340] sm:$0xff]
    %v693 = vld [vmem:[#allocation5 + $0x348] sm:$0xff]
    %v694 = vld [vmem:[#allocation5 + $0x350] sm:$0xff]
    %v695 = vld [vmem:[#allocation5 + $0x358] sm:$0xff]
    %v696 = vld [vmem:[#allocation5 + $0x360] sm:$0xff]
    %v697 = vld [vmem:[#allocation5 + $0x368] sm:$0xff]
    %v698 = vld [vmem:[#allocation5 + $0x370] sm:$0xff]
    %v699 = vld [vmem:[#allocation5 + $0x378] sm:$0xff]
    %v700 = vld [vmem:[#allocation5 + $0x380] sm:$0xff]
    %v701 = vld [vmem:[#allocation5 + $0x388] sm:$0xff]
    %v702 = vld [vmem:[#allocation5 + $0x390] sm:$0xff]
    %v703 = vld [vmem:[#allocation5 + $0x398] sm:$0xff]
    %v704 = vld [vmem:[#allocation5 + $0x3a0] sm:$0xff]
    %v705 = vld [vmem:[#allocation5 + $0x3a8] sm:$0xff]
    %v706 = vld [vmem:[#allocation5 + $0x3b0] sm:$0xff]
    %v707 = vld [vmem:[#allocation5 + $0x3b8] sm:$0xff]
    %v708 = vld [vmem:[#allocation5 + $0x3c0] sm:$0xff]
    %v709 = vld [vmem:[#allocation5 + $0x3c8] sm:$0xff]
    %v710 = vld [vmem:[#allocation5 + $0x3d0] sm:$0xff]
    %v711 = vld [vmem:[#allocation5 + $0x3d8] sm:$0xff]
    %v712 = vld [vmem:[#allocation5 + $0x3e0] sm:$0xff]
    %v713 = vld [vmem:[#allocation5 + $0x3e8] sm:$0xff]
    %v714 = vld [vmem:[#allocation5 + $0x3f0] sm:$0xff]
    %v715 = vld [vmem:[#allocation5 + $0x3f8] sm:$0xff]
    %v716 = vld [vmem:[%s11] sm:$0xf]
    %v718 = vlaneseq
    %v719 = vshrl.u32 %v718, 7
    %v720 = vsub.s32 0, %v719
    %v721 = vrot.slane %v716, %v720
    %v722 = vlaneseq
    %v723 = vshrl.u32 %v722, 7
    %v724 = vsub.s32 1, %v723
    %v725 = vrot.slane %v716, %v724
    %v726 = vlaneseq
    %v727 = vshrl.u32 %v726, 7
    %v728 = vsub.s32 2, %v727
    %v729 = vrot.slane %v716, %v728
    %v730 = vlaneseq
    %v731 = vshrl.u32 %v730, 7
    %v732 = vsub.s32 3, %v731
    %v733 = vrot.slane %v716, %v732
    %v866 = vunpack.c.l.b16 %v588
    %v867 = vunpack.c.h.b16 %v588
    %v868 = vunpack.c.l.b16 %v589
    %v869 = vunpack.c.h.b16 %v589
    %v870 = vunpack.c.l.b16 %v590
    %v871 = vunpack.c.h.b16 %v590
    %v872 = vunpack.c.l.b16 %v591
    %v873 = vunpack.c.h.b16 %v591
    %v874 = vunpack.c.l.b16 %v592
    %v875 = vunpack.c.h.b16 %v592
    %v876 = vunpack.c.l.b16 %v593
    %v877 = vunpack.c.h.b16 %v593
    %v878 = vunpack.c.l.b16 %v594
    %v879 = vunpack.c.h.b16 %v594
    %v880 = vunpack.c.l.b16 %v595
    %v881 = vunpack.c.h.b16 %v595
    %v882 = vunpack.c.l.b16 %v596
    %v883 = vunpack.c.h.b16 %v596
    %v884 = vunpack.c.l.b16 %v597
    %v885 = vunpack.c.h.b16 %v597
    %v886 = vunpack.c.l.b16 %v598
    %v887 = vunpack.c.h.b16 %v598
    %v888 = vunpack.c.l.b16 %v599
    %v889 = vunpack.c.h.b16 %v599
    %v890 = vunpack.c.l.b16 %v600
    %v891 = vunpack.c.h.b16 %v600
    %v892 = vunpack.c.l.b16 %v601
    %v893 = vunpack.c.h.b16 %v601
    %v894 = vunpack.c.l.b16 %v602
    %v895 = vunpack.c.h.b16 %v602
    %v896 = vunpack.c.l.b16 %v603
    %v897 = vunpack.c.h.b16 %v603
    %v898 = vunpack.c.l.b16 %v604
    %v899 = vunpack.c.h.b16 %v604
    %v900 = vunpack.c.l.b16 %v605
    %v901 = vunpack.c.h.b16 %v605
    %v902 = vunpack.c.l.b16 %v606
    %v903 = vunpack.c.h.b16 %v606
    %v904 = vunpack.c.l.b16 %v607
    %v905 = vunpack.c.h.b16 %v607
    %v906 = vunpack.c.l.b16 %v608
    %v907 = vunpack.c.h.b16 %v608
    %v908 = vunpack.c.l.b16 %v609
    %v909 = vunpack.c.h.b16 %v609
    %v910 = vunpack.c.l.b16 %v610
    %v911 = vunpack.c.h.b16 %v610
    %v912 = vunpack.c.l.b16 %v611
    %v913 = vunpack.c.h.b16 %v611
    %v914 = vunpack.c.l.b16 %v612
    %v915 = vunpack.c.h.b16 %v612
    %v916 = vunpack.c.l.b16 %v613
    %v917 = vunpack.c.h.b16 %v613
    %v918 = vunpack.c.l.b16 %v614
    %v919 = vunpack.c.h.b16 %v614
    %v920 = vunpack.c.l.b16 %v615
    %v921 = vunpack.c.h.b16 %v615
    %v922 = vunpack.c.l.b16 %v616
    %v923 = vunpack.c.h.b16 %v616
    %v924 = vunpack.c.l.b16 %v617
    %v925 = vunpack.c.h.b16 %v617
    %v926 = vunpack.c.l.b16 %v618
    %v927 = vunpack.c.h.b16 %v618
    %v928 = vunpack.c.l.b16 %v619
    %v929 = vunpack.c.h.b16 %v619
    %v930 = vunpack.c.l.b16 %v620
    %v931 = vunpack.c.h.b16 %v620
    %v932 = vunpack.c.l.b16 %v621
    %v933 = vunpack.c.h.b16 %v621
    %v934 = vunpack.c.l.b16 %v622
    %v935 = vunpack.c.h.b16 %v622
    %v936 = vunpack.c.l.b16 %v623
    %v937 = vunpack.c.h.b16 %v623
    %v938 = vunpack.c.l.b16 %v624
    %v939 = vunpack.c.h.b16 %v624
    %v940 = vunpack.c.l.b16 %v625
    %v941 = vunpack.c.h.b16 %v625
    %v942 = vunpack.c.l.b16 %v626
    %v943 = vunpack.c.h.b16 %v626
    %v944 = vunpack.c.l.b16 %v627
    %v945 = vunpack.c.h.b16 %v627
    %v946 = vunpack.c.l.b16 %v628
    %v947 = vunpack.c.h.b16 %v628
    %v948 = vunpack.c.l.b16 %v629
    %v949 = vunpack.c.h.b16 %v629
    %v950 = vunpack.c.l.b16 %v630
    %v951 = vunpack.c.h.b16 %v630
    %v952 = vunpack.c.l.b16 %v631
    %v953 = vunpack.c.h.b16 %v631
    %v954 = vunpack.c.l.b16 %v632
    %v955 = vunpack.c.h.b16 %v632
    %v956 = vunpack.c.l.b16 %v633
    %v957 = vunpack.c.h.b16 %v633
    %v958 = vunpack.c.l.b16 %v634
    %v959 = vunpack.c.h.b16 %v634
    %v960 = vunpack.c.l.b16 %v635
    %v961 = vunpack.c.h.b16 %v635
    %v962 = vunpack.c.l.b16 %v636
    %v963 = vunpack.c.h.b16 %v636
    %v964 = vunpack.c.l.b16 %v637
    %v965 = vunpack.c.h.b16 %v637
    %v966 = vunpack.c.l.b16 %v638
    %v967 = vunpack.c.h.b16 %v638
    %v968 = vunpack.c.l.b16 %v639
    %v969 = vunpack.c.h.b16 %v639
    %v970 = vunpack.c.l.b16 %v640
    %v971 = vunpack.c.h.b16 %v640
    %v972 = vunpack.c.l.b16 %v641
    %v973 = vunpack.c.h.b16 %v641
    %v974 = vunpack.c.l.b16 %v642
    %v975 = vunpack.c.h.b16 %v642
    %v976 = vunpack.c.l.b16 %v643
    %v977 = vunpack.c.h.b16 %v643
    %v978 = vunpack.c.l.b16 %v644
    %v979 = vunpack.c.h.b16 %v644
    %v980 = vunpack.c.l.b16 %v645
    %v981 = vunpack.c.h.b16 %v645
    %v982 = vunpack.c.l.b16 %v646
    %v983 = vunpack.c.h.b16 %v646
    %v984 = vunpack.c.l.b16 %v647
    %v985 = vunpack.c.h.b16 %v647
    %v986 = vunpack.c.l.b16 %v648
    %v987 = vunpack.c.h.b16 %v648
    %v988 = vunpack.c.l.b16 %v649
    %v989 = vunpack.c.h.b16 %v649
    %v990 = vunpack.c.l.b16 %v650
    %v991 = vunpack.c.h.b16 %v650
    %v992 = vunpack.c.l.b16 %v651
    %v993 = vunpack.c.h.b16 %v651
    %v994 = vunpack.c.l.b16 %v652
    %v995 = vunpack.c.h.b16 %v652
    %v996 = vunpack.c.l.b16 %v653
    %v997 = vunpack.c.h.b16 %v653
    %v998 = vunpack.c.l.b16 %v654
    %v999 = vunpack.c.h.b16 %v654
    %v1000 = vunpack.c.l.b16 %v655
    %v1001 = vunpack.c.h.b16 %v655
    %v1002 = vunpack.c.l.b16 %v656
    %v1003 = vunpack.c.h.b16 %v656
    %v1004 = vunpack.c.l.b16 %v657
    %v1005 = vunpack.c.h.b16 %v657
    %v1006 = vunpack.c.l.b16 %v658
    %v1007 = vunpack.c.h.b16 %v658
    %v1008 = vunpack.c.l.b16 %v659
    %v1009 = vunpack.c.h.b16 %v659
    %v1010 = vunpack.c.l.b16 %v660
    %v1011 = vunpack.c.h.b16 %v660
    %v1012 = vunpack.c.l.b16 %v661
    %v1013 = vunpack.c.h.b16 %v661
    %v1014 = vunpack.c.l.b16 %v662
    %v1015 = vunpack.c.h.b16 %v662
    %v1016 = vunpack.c.l.b16 %v663
    %v1017 = vunpack.c.h.b16 %v663
    %v1018 = vunpack.c.l.b16 %v664
    %v1019 = vunpack.c.h.b16 %v664
    %v1020 = vunpack.c.l.b16 %v665
    %v1021 = vunpack.c.h.b16 %v665
    %v1022 = vunpack.c.l.b16 %v666
    %v1023 = vunpack.c.h.b16 %v666
    %v1024 = vunpack.c.l.b16 %v667
    %v1025 = vunpack.c.h.b16 %v667
    %v1026 = vunpack.c.l.b16 %v668
    %v1027 = vunpack.c.h.b16 %v668
    %v1028 = vunpack.c.l.b16 %v669
    %v1029 = vunpack.c.h.b16 %v669
    %v1030 = vunpack.c.l.b16 %v670
    %v1031 = vunpack.c.h.b16 %v670
    %v1032 = vunpack.c.l.b16 %v671
    %v1033 = vunpack.c.h.b16 %v671
    %v1034 = vunpack.c.l.b16 %v672
    %v1035 = vunpack.c.h.b16 %v672
    %v1036 = vunpack.c.l.b16 %v673
    %v1037 = vunpack.c.h.b16 %v673
    %v1038 = vunpack.c.l.b16 %v674
    %v1039 = vunpack.c.h.b16 %v674
    %v1040 = vunpack.c.l.b16 %v675
    %v1041 = vunpack.c.h.b16 %v675
    %v1042 = vunpack.c.l.b16 %v676
    %v1043 = vunpack.c.h.b16 %v676
    %v1044 = vunpack.c.l.b16 %v677
    %v1045 = vunpack.c.h.b16 %v677
    %v1046 = vunpack.c.l.b16 %v678
    %v1047 = vunpack.c.h.b16 %v678
    %v1048 = vunpack.c.l.b16 %v679
    %v1049 = vunpack.c.h.b16 %v679
    %v1050 = vunpack.c.l.b16 %v680
    %v1051 = vunpack.c.h.b16 %v680
    %v1052 = vunpack.c.l.b16 %v681
    %v1053 = vunpack.c.h.b16 %v681
    %v1054 = vunpack.c.l.b16 %v682
    %v1055 = vunpack.c.h.b16 %v682
    %v1056 = vunpack.c.l.b16 %v683
    %v1057 = vunpack.c.h.b16 %v683
    %v1058 = vunpack.c.l.b16 %v684
    %v1059 = vunpack.c.h.b16 %v684
    %v1060 = vunpack.c.l.b16 %v685
    %v1061 = vunpack.c.h.b16 %v685
    %v1062 = vunpack.c.l.b16 %v686
    %v1063 = vunpack.c.h.b16 %v686
    %v1064 = vunpack.c.l.b16 %v687
    %v1065 = vunpack.c.h.b16 %v687
    %v1066 = vunpack.c.l.b16 %v688
    %v1067 = vunpack.c.h.b16 %v688
    %v1068 = vunpack.c.l.b16 %v689
    %v1069 = vunpack.c.h.b16 %v689
    %v1070 = vunpack.c.l.b16 %v690
    %v1071 = vunpack.c.h.b16 %v690
    %v1072 = vunpack.c.l.b16 %v691
    %v1073 = vunpack.c.h.b16 %v691
    %v1074 = vunpack.c.l.b16 %v692
    %v1075 = vunpack.c.h.b16 %v692
    %v1076 = vunpack.c.l.b16 %v693
    %v1077 = vunpack.c.h.b16 %v693
    %v1078 = vunpack.c.l.b16 %v694
    %v1079 = vunpack.c.h.b16 %v694
    %v1080 = vunpack.c.l.b16 %v695
    %v1081 = vunpack.c.h.b16 %v695
    %v1082 = vunpack.c.l.b16 %v696
    %v1083 = vunpack.c.h.b16 %v696
    %v1084 = vunpack.c.l.b16 %v697
    %v1085 = vunpack.c.h.b16 %v697
    %v1086 = vunpack.c.l.b16 %v698
    %v1087 = vunpack.c.h.b16 %v698
    %v1088 = vunpack.c.l.b16 %v699
    %v1089 = vunpack.c.h.b16 %v699
    %v1090 = vunpack.c.l.b16 %v700
    %v1091 = vunpack.c.h.b16 %v700
    %v1092 = vunpack.c.l.b16 %v701
    %v1093 = vunpack.c.h.b16 %v701
    %v1094 = vunpack.c.l.b16 %v702
    %v1095 = vunpack.c.h.b16 %v702
    %v1096 = vunpack.c.l.b16 %v703
    %v1097 = vunpack.c.h.b16 %v703
    %v1098 = vunpack.c.l.b16 %v704
    %v1099 = vunpack.c.h.b16 %v704
    %v1100 = vunpack.c.l.b16 %v705
    %v1101 = vunpack.c.h.b16 %v705
    %v1102 = vunpack.c.l.b16 %v706
    %v1103 = vunpack.c.h.b16 %v706
    %v1104 = vunpack.c.l.b16 %v707
    %v1105 = vunpack.c.h.b16 %v707
    %v1106 = vunpack.c.l.b16 %v708
    %v1107 = vunpack.c.h.b16 %v708
    %v1108 = vunpack.c.l.b16 %v709
    %v1109 = vunpack.c.h.b16 %v709
    %v1110 = vunpack.c.l.b16 %v710
    %v1111 = vunpack.c.h.b16 %v710
    %v1112 = vunpack.c.l.b16 %v711
    %v1113 = vunpack.c.h.b16 %v711
    %v1114 = vunpack.c.l.b16 %v712
    %v1115 = vunpack.c.h.b16 %v712
    %v1116 = vunpack.c.l.b16 %v713
    %v1117 = vunpack.c.h.b16 %v713
    %v1118 = vunpack.c.l.b16 %v714
    %v1119 = vunpack.c.h.b16 %v714
    %v1120 = vunpack.c.l.b16 %v715
    %v1121 = vunpack.c.h.b16 %v715
    %v1122 = vpack.c.b16 %v870, %v866
    %v1123 = vpack.c.b16 %v871, %v867
    %v1124 = vpack.c.b16 %v872, %v868
    %v1125 = vpack.c.b16 %v873, %v869
    %v1126 = vpack.c.b16 %v878, %v874
    %v1127 = vpack.c.b16 %v879, %v875
    %v1128 = vpack.c.b16 %v880, %v876
    %v1129 = vpack.c.b16 %v881, %v877
    %v1130 = vpack.c.b16 %v886, %v882
    %v1131 = vpack.c.b16 %v887, %v883
    %v1132 = vpack.c.b16 %v888, %v884
    %v1133 = vpack.c.b16 %v889, %v885
    %v1134 = vpack.c.b16 %v894, %v890
    %v1135 = vpack.c.b16 %v895, %v891
    %v1136 = vpack.c.b16 %v896, %v892
    %v1137 = vpack.c.b16 %v897, %v893
    %v1138 = vpack.c.b16 %v902, %v898
    %v1139 = vpack.c.b16 %v903, %v899
    %v1140 = vpack.c.b16 %v904, %v900
    %v1141 = vpack.c.b16 %v905, %v901
    %v1142 = vpack.c.b16 %v910, %v906
    %v1143 = vpack.c.b16 %v911, %v907
    %v1144 = vpack.c.b16 %v912, %v908
    %v1145 = vpack.c.b16 %v913, %v909
    %v1146 = vpack.c.b16 %v918, %v914
    %v1147 = vpack.c.b16 %v919, %v915
    %v1148 = vpack.c.b16 %v920, %v916
    %v1149 = vpack.c.b16 %v921, %v917
    %v1150 = vpack.c.b16 %v926, %v922
    %v1151 = vpack.c.b16 %v927, %v923
    %v1152 = vpack.c.b16 %v928, %v924
    %v1153 = vpack.c.b16 %v929, %v925
    %v1154 = vpack.c.b16 %v934, %v930
    %v1155 = vpack.c.b16 %v935, %v931
    %v1156 = vpack.c.b16 %v936, %v932
    %v1157 = vpack.c.b16 %v937, %v933
    %v1158 = vpack.c.b16 %v942, %v938
    %v1159 = vpack.c.b16 %v943, %v939
    %v1160 = vpack.c.b16 %v944, %v940
    %v1161 = vpack.c.b16 %v945, %v941
    %v1162 = vpack.c.b16 %v950, %v946
    %v1163 = vpack.c.b16 %v951, %v947
    %v1164 = vpack.c.b16 %v952, %v948
    %v1165 = vpack.c.b16 %v953, %v949
    %v1166 = vpack.c.b16 %v958, %v954
    %v1167 = vpack.c.b16 %v959, %v955
    %v1168 = vpack.c.b16 %v960, %v956
    %v1169 = vpack.c.b16 %v961, %v957
    %v1170 = vpack.c.b16 %v966, %v962
    %v1171 = vpack.c.b16 %v967, %v963
    %v1172 = vpack.c.b16 %v968, %v964
    %v1173 = vpack.c.b16 %v969, %v965
    %v1174 = vpack.c.b16 %v974, %v970
    %v1175 = vpack.c.b16 %v975, %v971
    %v1176 = vpack.c.b16 %v976, %v972
    %v1177 = vpack.c.b16 %v977, %v973
    %v1178 = vpack.c.b16 %v982, %v978
    %v1179 = vpack.c.b16 %v983, %v979
    %v1180 = vpack.c.b16 %v984, %v980
    %v1181 = vpack.c.b16 %v985, %v981
    %v1182 = vpack.c.b16 %v990, %v986
    %v1183 = vpack.c.b16 %v991, %v987
    %v1184 = vpack.c.b16 %v992, %v988
    %v1185 = vpack.c.b16 %v993, %v989
    %v1186 = vpack.c.b16 %v998, %v994
    %v1187 = vpack.c.b16 %v999, %v995
    %v1188 = vpack.c.b16 %v1000, %v996
    %v1189 = vpack.c.b16 %v1001, %v997
    %v1190 = vpack.c.b16 %v1006, %v1002
    %v1191 = vpack.c.b16 %v1007, %v1003
    %v1192 = vpack.c.b16 %v1008, %v1004
    %v1193 = vpack.c.b16 %v1009, %v1005
    %v1194 = vpack.c.b16 %v1014, %v1010
    %v1195 = vpack.c.b16 %v1015, %v1011
    %v1196 = vpack.c.b16 %v1016, %v1012
    %v1197 = vpack.c.b16 %v1017, %v1013
    %v1198 = vpack.c.b16 %v1022, %v1018
    %v1199 = vpack.c.b16 %v1023, %v1019
    %v1200 = vpack.c.b16 %v1024, %v1020
    %v1201 = vpack.c.b16 %v1025, %v1021
    %v1202 = vpack.c.b16 %v1030, %v1026
    %v1203 = vpack.c.b16 %v1031, %v1027
    %v1204 = vpack.c.b16 %v1032, %v1028
    %v1205 = vpack.c.b16 %v1033, %v1029
    %v1206 = vpack.c.b16 %v1038, %v1034
    %v1207 = vpack.c.b16 %v1039, %v1035
    %v1208 = vpack.c.b16 %v1040, %v1036
    %v1209 = vpack.c.b16 %v1041, %v1037
    %v1210 = vpack.c.b16 %v1046, %v1042
    %v1211 = vpack.c.b16 %v1047, %v1043
    %v1212 = vpack.c.b16 %v1048, %v1044
    %v1213 = vpack.c.b16 %v1049, %v1045
    %v1214 = vpack.c.b16 %v1054, %v1050
    %v1215 = vpack.c.b16 %v1055, %v1051
    %v1216 = vpack.c.b16 %v1056, %v1052
    %v1217 = vpack.c.b16 %v1057, %v1053
    %v1218 = vpack.c.b16 %v1062, %v1058
    %v1219 = vpack.c.b16 %v1063, %v1059
    %v1220 = vpack.c.b16 %v1064, %v1060
    %v1221 = vpack.c.b16 %v1065, %v1061
    %v1222 = vpack.c.b16 %v1070, %v1066
    %v1223 = vpack.c.b16 %v1071, %v1067
    %v1224 = vpack.c.b16 %v1072, %v1068
    %v1225 = vpack.c.b16 %v1073, %v1069
    %v1226 = vpack.c.b16 %v1078, %v1074
    %v1227 = vpack.c.b16 %v1079, %v1075
    %v1228 = vpack.c.b16 %v1080, %v1076
    %v1229 = vpack.c.b16 %v1081, %v1077
    %v1230 = vpack.c.b16 %v1086, %v1082
    %v1231 = vpack.c.b16 %v1087, %v1083
    %v1232 = vpack.c.b16 %v1088, %v1084
    %v1233 = vpack.c.b16 %v1089, %v1085
    %v1234 = vpack.c.b16 %v1094, %v1090
    %v1235 = vpack.c.b16 %v1095, %v1091
    %v1236 = vpack.c.b16 %v1096, %v1092
    %v1237 = vpack.c.b16 %v1097, %v1093
    %v1238 = vpack.c.b16 %v1102, %v1098
    %v1239 = vpack.c.b16 %v1103, %v1099
    %v1240 = vpack.c.b16 %v1104, %v1100
    %v1241 = vpack.c.b16 %v1105, %v1101
    %v1242 = vpack.c.b16 %v1110, %v1106
    %v1243 = vpack.c.b16 %v1111, %v1107
    %v1244 = vpack.c.b16 %v1112, %v1108
    %v1245 = vpack.c.b16 %v1113, %v1109
    %v1246 = vpack.c.b16 %v1118, %v1114
    %v1247 = vpack.c.b16 %v1119, %v1115
    %v1248 = vpack.c.b16 %v1120, %v1116
    %v1249 = vpack.c.b16 %v1121, %v1117
    %1378 = vmatprep.subr.bf16.mxu0 %v1151
    %1379 = vmatpush1.bf16.msra.mxu0 %v1150
    %1380 = vmatprep.subr.bf16.mxu0 %v1147
    %1381 = vmatpush1.bf16.msra.mxu0 %v1146
    %1382 = vmatprep.subr.bf16.mxu0 %v1143
    %1383 = vmatpush1.bf16.msra.mxu0 %v1142
    %1384 = vmatprep.subr.bf16.mxu0 %v1139
    %1385 = vmatpush1.bf16.msra.mxu0 %v1138
    %1386 = vmatprep.subr.bf16.mxu0 %v1135
    %1387 = vmatpush1.bf16.msra.mxu0 %v1134
    %1388 = vmatprep.subr.bf16.mxu0 %v1131
    %1389 = vmatpush1.bf16.msra.mxu0 %v1130
    %1390 = vmatprep.subr.bf16.mxu0 %v1127
    %1391 = vmatpush1.bf16.msra.mxu0 %v1126
    %1392 = vmatprep.subr.bf16.mxu0 %v1123
    %1393 = vmatpush1.bf16.msra.mxu0 %v1122
    %1394 = vmatprep.subr.bf16.mxu0 %v1183
    %1395 = vmatpush2.bf16.msra.mxu0 %v1182
    %1396 = vmatprep.subr.bf16.mxu0 %v1179
    %1397 = vmatpush2.bf16.msra.mxu0 %v1178
    %1398 = vmatprep.subr.bf16.mxu0 %v1175
    %1399 = vmatpush2.bf16.msra.mxu0 %v1174
    %1400 = vmatprep.subr.bf16.mxu0 %v1171
    %1401 = vmatpush2.bf16.msra.mxu0 %v1170
    %1402 = vmatprep.subr.bf16.mxu0 %v1167
    %1403 = vmatpush2.bf16.msra.mxu0 %v1166
    %1404 = vmatprep.subr.bf16.mxu0 %v1163
    %1405 = vmatpush2.bf16.msra.mxu0 %v1162
    %1406 = vmatprep.subr.bf16.mxu0 %v1159
    %1407 = vmatpush2.bf16.msra.mxu0 %v1158
    %1408 = vmatprep.subr.bf16.mxu0 %v1155
    %1409 = vmatpush2.bf16.msra.mxu0 %v1154
    %1410 = vmatprep.mubr.bf16.mxu0 %v585
    %1411 = vmatmul.mubr.bf16.gmra.mxu0 %v584
    %v1412 = vpop.f32.mrf.mxu0
    %v1413 = vadd.f32 %v721, %v1412
    %v1414 = vpop.f32.mrf.mxu0
    %v1415 = vadd.f32 %v725, %v1414
    %v1416 = vpop.f32.mrf.mxu0
    %v1417 = vpop.f32.mrf.mxu0
    %1418 = vdwg.mxu0
    %1419 = vmatprep.subr.bf16.mxu0 %v1215
    %1420 = vmatpush1.bf16.msra.mxu0 %v1214
    %1421 = vmatprep.subr.bf16.mxu0 %v1211
    %1422 = vmatpush1.bf16.msra.mxu0 %v1210
    %1423 = vmatprep.subr.bf16.mxu0 %v1207
    %1424 = vmatpush1.bf16.msra.mxu0 %v1206
    %1425 = vmatprep.subr.bf16.mxu0 %v1203
    %1426 = vmatpush1.bf16.msra.mxu0 %v1202
    %1427 = vmatprep.subr.bf16.mxu0 %v1199
    %1428 = vmatpush1.bf16.msra.mxu0 %v1198
    %1429 = vmatprep.subr.bf16.mxu0 %v1195
    %1430 = vmatpush1.bf16.msra.mxu0 %v1194
    %1431 = vmatprep.subr.bf16.mxu0 %v1191
    %1432 = vmatpush1.bf16.msra.mxu0 %v1190
    %1433 = vmatprep.subr.bf16.mxu0 %v1187
    %1434 = vmatpush1.bf16.msra.mxu0 %v1186
    %1435 = vmatprep.subr.bf16.mxu0 %v1247
    %1436 = vmatpush2.bf16.msra.mxu0 %v1246
    %1437 = vmatprep.subr.bf16.mxu0 %v1243
    %1438 = vmatpush2.bf16.msra.mxu0 %v1242
    %1439 = vmatprep.subr.bf16.mxu0 %v1239
    %1440 = vmatpush2.bf16.msra.mxu0 %v1238
    %1441 = vmatprep.subr.bf16.mxu0 %v1235
    %1442 = vmatpush2.bf16.msra.mxu0 %v1234
    %1443 = vmatprep.subr.bf16.mxu0 %v1231
    %1444 = vmatpush2.bf16.msra.mxu0 %v1230
    %1445 = vmatprep.subr.bf16.mxu0 %v1227
    %1446 = vmatpush2.bf16.msra.mxu0 %v1226
    %1447 = vmatprep.subr.bf16.mxu0 %v1223
    %1448 = vmatpush2.bf16.msra.mxu0 %v1222
    %1449 = vmatprep.subr.bf16.mxu0 %v1219
    %1450 = vmatpush2.bf16.msra.mxu0 %v1218
    %1451 = vmatprep.mubr.bf16.mxu0 %v587
    %1452 = vmatmul.mubr.bf16.gmra.mxu0 %v586
    %v1453 = vpop.f32.mrf.mxu0
    %v1454 = vadd.f32 %v1413, %v1453
    %v1455 = vpop.f32.mrf.mxu0
    %v1456 = vadd.f32 %v1415, %v1455
    %v1457 = vpop.f32.mrf.mxu0
    %v1458 = vpop.f32.mrf.mxu0
    %1459 = vdwg.mxu0
    %1460 = vmatprep.subr.bf16.mxu0 %v1153
    %1461 = vmatpush1.bf16.msra.mxu0 %v1152
    %1462 = vmatprep.subr.bf16.mxu0 %v1149
    %1463 = vmatpush1.bf16.msra.mxu0 %v1148
    %1464 = vmatprep.subr.bf16.mxu0 %v1145
    %1465 = vmatpush1.bf16.msra.mxu0 %v1144
    %1466 = vmatprep.subr.bf16.mxu0 %v1141
    %1467 = vmatpush1.bf16.msra.mxu0 %v1140
    %1468 = vmatprep.subr.bf16.mxu0 %v1137
    %1469 = vmatpush1.bf16.msra.mxu0 %v1136
    %1470 = vmatprep.subr.bf16.mxu0 %v1133
    %1471 = vmatpush1.bf16.msra.mxu0 %v1132
    %1472 = vmatprep.subr.bf16.mxu0 %v1129
    %1473 = vmatpush1.bf16.msra.mxu0 %v1128
    %1474 = vmatprep.subr.bf16.mxu0 %v1125
    %1475 = vmatpush1.bf16.msra.mxu0 %v1124
    %1476 = vmatprep.subr.bf16.mxu0 %v1185
    %1477 = vmatpush2.bf16.msra.mxu0 %v1184
    %1478 = vmatprep.subr.bf16.mxu0 %v1181
    %1479 = vmatpush2.bf16.msra.mxu0 %v1180
    %1480 = vmatprep.subr.bf16.mxu0 %v1177
    %1481 = vmatpush2.bf16.msra.mxu0 %v1176
    %1482 = vmatprep.subr.bf16.mxu0 %v1173
    %1483 = vmatpush2.bf16.msra.mxu0 %v1172
    %1484 = vmatprep.subr.bf16.mxu0 %v1169
    %1485 = vmatpush2.bf16.msra.mxu0 %v1168
    %1486 = vmatprep.subr.bf16.mxu0 %v1165
    %1487 = vmatpush2.bf16.msra.mxu0 %v1164
    %1488 = vmatprep.subr.bf16.mxu0 %v1161
    %1489 = vmatpush2.bf16.msra.mxu0 %v1160
    %1490 = vmatprep.subr.bf16.mxu0 %v1157
    %1491 = vmatpush2.bf16.msra.mxu0 %v1156
    %1492 = vmatprep.mubr.bf16.mxu0 %v585
    %1493 = vmatmul.mubr.bf16.gmra.mxu0 %v584
    %v1494 = vpop.f32.mrf.mxu0
    %v1495 = vadd.f32 %v729, %v1494
    %v1496 = vpop.f32.mrf.mxu0
    %v1497 = vadd.f32 %v733, %v1496
    %v1498 = vpop.f32.mrf.mxu0
    %v1499 = vpop.f32.mrf.mxu0
    %1500 = vdwg.mxu0
    %1501 = vmatprep.subr.bf16.mxu0 %v1217
    %1502 = vmatpush1.bf16.msra.mxu0 %v1216
    %1503 = vmatprep.subr.bf16.mxu0 %v1213
    %1504 = vmatpush1.bf16.msra.mxu0 %v1212
    %1505 = vmatprep.subr.bf16.mxu0 %v1209
    %1506 = vmatpush1.bf16.msra.mxu0 %v1208
    %1507 = vmatprep.subr.bf16.mxu0 %v1205
    %1508 = vmatpush1.bf16.msra.mxu0 %v1204
    %1509 = vmatprep.subr.bf16.mxu0 %v1201
    %1510 = vmatpush1.bf16.msra.mxu0 %v1200
    %1511 = vmatprep.subr.bf16.mxu0 %v1197
    %1512 = vmatpush1.bf16.msra.mxu0 %v1196
    %1513 = vmatprep.subr.bf16.mxu0 %v1193
    %1514 = vmatpush1.bf16.msra.mxu0 %v1192
    %1515 = vmatprep.subr.bf16.mxu0 %v1189
    %1516 = vmatpush1.bf16.msra.mxu0 %v1188
    %1517 = vmatprep.subr.bf16.mxu0 %v1249
    %1518 = vmatpush2.bf16.msra.mxu0 %v1248
    %1519 = vmatprep.subr.bf16.mxu0 %v1245
    %1520 = vmatpush2.bf16.msra.mxu0 %v1244
    %1521 = vmatprep.subr.bf16.mxu0 %v1241
    %1522 = vmatpush2.bf16.msra.mxu0 %v1240
    %1523 = vmatprep.subr.bf16.mxu0 %v1237
    %1524 = vmatpush2.bf16.msra.mxu0 %v1236
    %1525 = vmatprep.subr.bf16.mxu0 %v1233
    %1526 = vmatpush2.bf16.msra.mxu0 %v1232
    %1527 = vmatprep.subr.bf16.mxu0 %v1229
    %1528 = vmatpush2.bf16.msra.mxu0 %v1228
    %1529 = vmatprep.subr.bf16.mxu0 %v1225
    %1530 = vmatpush2.bf16.msra.mxu0 %v1224
    %1531 = vmatprep.subr.bf16.mxu0 %v1221
    %1532 = vmatpush2.bf16.msra.mxu0 %v1220
    %1533 = vmatprep.mubr.bf16.mxu0 %v587
    %1534 = vmatmul.mubr.bf16.gmra.mxu0 %v586
    %v1535 = vpop.f32.mrf.mxu0
    %v1536 = vadd.f32 %v1495, %v1535
    %v1537 = vpop.f32.mrf.mxu0
    %v1538 = vadd.f32 %v1497, %v1537
    %v1539 = vpop.f32.mrf.mxu0
    %v1540 = vpop.f32.mrf.mxu0
    %1541 = vdwg.mxu0
    %v1542 = vxor.u32 %v1454, 2147483648
    %v1543 = vxor.u32 %v1456, 2147483648
    %v1544 = vxor.u32 %v1536, 2147483648
    %v1545 = vxor.u32 %v1538, 2147483648
    %v1546 = vmul.f32 %v1542, 1.442695
    %v1547 = vpow.pop %v1546
    %v1548 = vmul.f32 %v1543, 1.442695
    %v1549 = vpow.pop %v1548
    %v1550 = vmul.f32 %v1544, 1.442695
    %v1551 = vpow.pop %v1550
    %v1552 = vmul.f32 %v1545, 1.442695
    %v1553 = vpow.pop %v1552
    %v1554 = vadd.f32 %v1547, 1.0
    %v1555 = vadd.f32 %v1549, 1.0
    %v1556 = vadd.f32 %v1551, 1.0
    %v1557 = vadd.f32 %v1553, 1.0
    %v1558 = vrcp.pop %v1554
    %v1559 = vmul.f32 1.0, %v1558
    %v1560 = vrcp.pop %v1555
    %v1561 = vmul.f32 1.0, %v1560
    %v1562 = vrcp.pop %v1556
    %v1563 = vmul.f32 1.0, %v1562
    %v1564 = vrcp.pop %v1557
    %v1565 = vmul.f32 1.0, %v1564
    %v1566 = vmul.f32 %v1454, %v1559
    %v1567 = vmul.f32 %v1456, %v1561
    %v1568 = vmul.f32 %v1536, %v1563
    %v1569 = vmul.f32 %v1538, %v1565
    %v1570 = vpack.c.bf16 %v1566, %v1566
    %v1571 = vpack.c.bf16 %v1567, %v1567
    %v1572 = vpack.c.bf16 %v1568, %v1568
    %v1573 = vpack.c.bf16 %v1569, %v1569
    %v1574 = vld [vmem:[#allocation7] sm:$0xff]
    %v1575 = vld [vmem:[#allocation7 + $0x8] sm:$0xff]
    %v1576 = vld [vmem:[#allocation7 + $0x10] sm:$0xff]
    %v1577 = vld [vmem:[#allocation7 + $0x18] sm:$0xff]
    %v1578 = vld [vmem:[#allocation7 + $0x20] sm:$0xff]
    %v1579 = vld [vmem:[#allocation7 + $0x28] sm:$0xff]
    %v1580 = vld [vmem:[#allocation7 + $0x30] sm:$0xff]
    %v1581 = vld [vmem:[#allocation7 + $0x38] sm:$0xff]
    %v1582 = vld [vmem:[#allocation7 + $0x40] sm:$0xff]
    %v1583 = vld [vmem:[#allocation7 + $0x48] sm:$0xff]
    %v1584 = vld [vmem:[#allocation7 + $0x50] sm:$0xff]
    %v1585 = vld [vmem:[#allocation7 + $0x58] sm:$0xff]
    %v1586 = vld [vmem:[#allocation7 + $0x60] sm:$0xff]
    %v1587 = vld [vmem:[#allocation7 + $0x68] sm:$0xff]
    %v1588 = vld [vmem:[#allocation7 + $0x70] sm:$0xff]
    %v1589 = vld [vmem:[#allocation7 + $0x78] sm:$0xff]
    %v1590 = vld [vmem:[#allocation7 + $0x80] sm:$0xff]
    %v1591 = vld [vmem:[#allocation7 + $0x88] sm:$0xff]
    %v1592 = vld [vmem:[#allocation7 + $0x90] sm:$0xff]
    %v1593 = vld [vmem:[#allocation7 + $0x98] sm:$0xff]
    %v1594 = vld [vmem:[#allocation7 + $0xa0] sm:$0xff]
    %v1595 = vld [vmem:[#allocation7 + $0xa8] sm:$0xff]
    %v1596 = vld [vmem:[#allocation7 + $0xb0] sm:$0xff]
    %v1597 = vld [vmem:[#allocation7 + $0xb8] sm:$0xff]
    %v1598 = vld [vmem:[#allocation7 + $0xc0] sm:$0xff]
    %v1599 = vld [vmem:[#allocation7 + $0xc8] sm:$0xff]
    %v1600 = vld [vmem:[#allocation7 + $0xd0] sm:$0xff]
    %v1601 = vld [vmem:[#allocation7 + $0xd8] sm:$0xff]
    %v1602 = vld [vmem:[#allocation7 + $0xe0] sm:$0xff]
    %v1603 = vld [vmem:[#allocation7 + $0xe8] sm:$0xff]
    %v1604 = vld [vmem:[#allocation7 + $0xf0] sm:$0xff]
    %v1605 = vld [vmem:[#allocation7 + $0xf8] sm:$0xff]
    %v1606 = vld [vmem:[#allocation7 + $0x100] sm:$0xff]
    %v1607 = vld [vmem:[#allocation7 + $0x108] sm:$0xff]
    %v1608 = vld [vmem:[#allocation7 + $0x110] sm:$0xff]
    %v1609 = vld [vmem:[#allocation7 + $0x118] sm:$0xff]
    %v1610 = vld [vmem:[#allocation7 + $0x120] sm:$0xff]
    %v1611 = vld [vmem:[#allocation7 + $0x128] sm:$0xff]
    %v1612 = vld [vmem:[#allocation7 + $0x130] sm:$0xff]
    %v1613 = vld [vmem:[#allocation7 + $0x138] sm:$0xff]
    %v1614 = vld [vmem:[#allocation7 + $0x140] sm:$0xff]
    %v1615 = vld [vmem:[#allocation7 + $0x148] sm:$0xff]
    %v1616 = vld [vmem:[#allocation7 + $0x150] sm:$0xff]
    %v1617 = vld [vmem:[#allocation7 + $0x158] sm:$0xff]
    %v1618 = vld [vmem:[#allocation7 + $0x160] sm:$0xff]
    %v1619 = vld [vmem:[#allocation7 + $0x168] sm:$0xff]
    %v1620 = vld [vmem:[#allocation7 + $0x170] sm:$0xff]
    %v1621 = vld [vmem:[#allocation7 + $0x178] sm:$0xff]
    %v1622 = vld [vmem:[#allocation7 + $0x180] sm:$0xff]
    %v1623 = vld [vmem:[#allocation7 + $0x188] sm:$0xff]
    %v1624 = vld [vmem:[#allocation7 + $0x190] sm:$0xff]
    %v1625 = vld [vmem:[#allocation7 + $0x198] sm:$0xff]
    %v1626 = vld [vmem:[#allocation7 + $0x1a0] sm:$0xff]
    %v1627 = vld [vmem:[#allocation7 + $0x1a8] sm:$0xff]
    %v1628 = vld [vmem:[#allocation7 + $0x1b0] sm:$0xff]
    %v1629 = vld [vmem:[#allocation7 + $0x1b8] sm:$0xff]
    %v1630 = vld [vmem:[#allocation7 + $0x1c0] sm:$0xff]
    %v1631 = vld [vmem:[#allocation7 + $0x1c8] sm:$0xff]
    %v1632 = vld [vmem:[#allocation7 + $0x1d0] sm:$0xff]
    %v1633 = vld [vmem:[#allocation7 + $0x1d8] sm:$0xff]
    %v1634 = vld [vmem:[#allocation7 + $0x1e0] sm:$0xff]
    %v1635 = vld [vmem:[#allocation7 + $0x1e8] sm:$0xff]
    %v1636 = vld [vmem:[#allocation7 + $0x1f0] sm:$0xff]
    %v1637 = vld [vmem:[#allocation7 + $0x1f8] sm:$0xff]
    %v1638 = vld [vmem:[#allocation7 + $0x200] sm:$0xff]
    %v1639 = vld [vmem:[#allocation7 + $0x208] sm:$0xff]
    %v1640 = vld [vmem:[#allocation7 + $0x210] sm:$0xff]
    %v1641 = vld [vmem:[#allocation7 + $0x218] sm:$0xff]
    %v1642 = vld [vmem:[#allocation7 + $0x220] sm:$0xff]
    %v1643 = vld [vmem:[#allocation7 + $0x228] sm:$0xff]
    %v1644 = vld [vmem:[#allocation7 + $0x230] sm:$0xff]
    %v1645 = vld [vmem:[#allocation7 + $0x238] sm:$0xff]
    %v1646 = vld [vmem:[#allocation7 + $0x240] sm:$0xff]
    %v1647 = vld [vmem:[#allocation7 + $0x248] sm:$0xff]
    %v1648 = vld [vmem:[#allocation7 + $0x250] sm:$0xff]
    %v1649 = vld [vmem:[#allocation7 + $0x258] sm:$0xff]
    %v1650 = vld [vmem:[#allocation7 + $0x260] sm:$0xff]
    %v1651 = vld [vmem:[#allocation7 + $0x268] sm:$0xff]
    %v1652 = vld [vmem:[#allocation7 + $0x270] sm:$0xff]
    %v1653 = vld [vmem:[#allocation7 + $0x278] sm:$0xff]
    %v1654 = vld [vmem:[#allocation7 + $0x280] sm:$0xff]
    %v1655 = vld [vmem:[#allocation7 + $0x288] sm:$0xff]
    %v1656 = vld [vmem:[#allocation7 + $0x290] sm:$0xff]
    %v1657 = vld [vmem:[#allocation7 + $0x298] sm:$0xff]
    %v1658 = vld [vmem:[#allocation7 + $0x2a0] sm:$0xff]
    %v1659 = vld [vmem:[#allocation7 + $0x2a8] sm:$0xff]
    %v1660 = vld [vmem:[#allocation7 + $0x2b0] sm:$0xff]
    %v1661 = vld [vmem:[#allocation7 + $0x2b8] sm:$0xff]
    %v1662 = vld [vmem:[#allocation7 + $0x2c0] sm:$0xff]
    %v1663 = vld [vmem:[#allocation7 + $0x2c8] sm:$0xff]
    %v1664 = vld [vmem:[#allocation7 + $0x2d0] sm:$0xff]
    %v1665 = vld [vmem:[#allocation7 + $0x2d8] sm:$0xff]
    %v1666 = vld [vmem:[#allocation7 + $0x2e0] sm:$0xff]
    %v1667 = vld [vmem:[#allocation7 + $0x2e8] sm:$0xff]
    %v1668 = vld [vmem:[#allocation7 + $0x2f0] sm:$0xff]
    %v1669 = vld [vmem:[#allocation7 + $0x2f8] sm:$0xff]
    %v1670 = vld [vmem:[#allocation7 + $0x300] sm:$0xff]
    %v1671 = vld [vmem:[#allocation7 + $0x308] sm:$0xff]
    %v1672 = vld [vmem:[#allocation7 + $0x310] sm:$0xff]
    %v1673 = vld [vmem:[#allocation7 + $0x318] sm:$0xff]
    %v1674 = vld [vmem:[#allocation7 + $0x320] sm:$0xff]
    %v1675 = vld [vmem:[#allocation7 + $0x328] sm:$0xff]
    %v1676 = vld [vmem:[#allocation7 + $0x330] sm:$0xff]
    %v1677 = vld [vmem:[#allocation7 + $0x338] sm:$0xff]
    %v1678 = vld [vmem:[#allocation7 + $0x340] sm:$0xff]
    %v1679 = vld [vmem:[#allocation7 + $0x348] sm:$0xff]
    %v1680 = vld [vmem:[#allocation7 + $0x350] sm:$0xff]
    %v1681 = vld [vmem:[#allocation7 + $0x358] sm:$0xff]
    %v1682 = vld [vmem:[#allocation7 + $0x360] sm:$0xff]
    %v1683 = vld [vmem:[#allocation7 + $0x368] sm:$0xff]
    %v1684 = vld [vmem:[#allocation7 + $0x370] sm:$0xff]
    %v1685 = vld [vmem:[#allocation7 + $0x378] sm:$0xff]
    %v1686 = vld [vmem:[#allocation7 + $0x380] sm:$0xff]
    %v1687 = vld [vmem:[#allocation7 + $0x388] sm:$0xff]
    %v1688 = vld [vmem:[#allocation7 + $0x390] sm:$0xff]
    %v1689 = vld [vmem:[#allocation7 + $0x398] sm:$0xff]
    %v1690 = vld [vmem:[#allocation7 + $0x3a0] sm:$0xff]
    %v1691 = vld [vmem:[#allocation7 + $0x3a8] sm:$0xff]
    %v1692 = vld [vmem:[#allocation7 + $0x3b0] sm:$0xff]
    %v1693 = vld [vmem:[#allocation7 + $0x3b8] sm:$0xff]
    %v1694 = vld [vmem:[#allocation7 + $0x3c0] sm:$0xff]
    %v1695 = vld [vmem:[#allocation7 + $0x3c8] sm:$0xff]
    %v1696 = vld [vmem:[#allocation7 + $0x3d0] sm:$0xff]
    %v1697 = vld [vmem:[#allocation7 + $0x3d8] sm:$0xff]
    %v1698 = vld [vmem:[#allocation7 + $0x3e0] sm:$0xff]
    %v1699 = vld [vmem:[#allocation7 + $0x3e8] sm:$0xff]
    %v1700 = vld [vmem:[#allocation7 + $0x3f0] sm:$0xff]
    %v1701 = vld [vmem:[#allocation7 + $0x3f8] sm:$0xff]
    %v1702 = vld [vmem:[%s13] sm:$0xf]
    %v1704 = vlaneseq
    %v1705 = vshrl.u32 %v1704, 7
    %v1706 = vsub.s32 0, %v1705
    %v1707 = vrot.slane %v1702, %v1706
    %v1708 = vlaneseq
    %v1709 = vshrl.u32 %v1708, 7
    %v1710 = vsub.s32 1, %v1709
    %v1711 = vrot.slane %v1702, %v1710
    %v1712 = vlaneseq
    %v1713 = vshrl.u32 %v1712, 7
    %v1714 = vsub.s32 2, %v1713
    %v1715 = vrot.slane %v1702, %v1714
    %v1716 = vlaneseq
    %v1717 = vshrl.u32 %v1716, 7
    %v1718 = vsub.s32 3, %v1717
    %v1719 = vrot.slane %v1702, %v1718
    %v1852 = vunpack.c.l.b16 %v1574
    %v1853 = vunpack.c.h.b16 %v1574
    %v1854 = vunpack.c.l.b16 %v1575
    %v1855 = vunpack.c.h.b16 %v1575
    %v1856 = vunpack.c.l.b16 %v1576
    %v1857 = vunpack.c.h.b16 %v1576
    %v1858 = vunpack.c.l.b16 %v1577
    %v1859 = vunpack.c.h.b16 %v1577
    %v1860 = vunpack.c.l.b16 %v1578
    %v1861 = vunpack.c.h.b16 %v1578
    %v1862 = vunpack.c.l.b16 %v1579
    %v1863 = vunpack.c.h.b16 %v1579
    %v1864 = vunpack.c.l.b16 %v1580
    %v1865 = vunpack.c.h.b16 %v1580
    %v1866 = vunpack.c.l.b16 %v1581
    %v1867 = vunpack.c.h.b16 %v1581
    %v1868 = vunpack.c.l.b16 %v1582
    %v1869 = vunpack.c.h.b16 %v1582
    %v1870 = vunpack.c.l.b16 %v1583
    %v1871 = vunpack.c.h.b16 %v1583
    %v1872 = vunpack.c.l.b16 %v1584
    %v1873 = vunpack.c.h.b16 %v1584
    %v1874 = vunpack.c.l.b16 %v1585
    %v1875 = vunpack.c.h.b16 %v1585
    %v1876 = vunpack.c.l.b16 %v1586
    %v1877 = vunpack.c.h.b16 %v1586
    %v1878 = vunpack.c.l.b16 %v1587
    %v1879 = vunpack.c.h.b16 %v1587
    %v1880 = vunpack.c.l.b16 %v1588
    %v1881 = vunpack.c.h.b16 %v1588
    %v1882 = vunpack.c.l.b16 %v1589
    %v1883 = vunpack.c.h.b16 %v1589
    %v1884 = vunpack.c.l.b16 %v1590
    %v1885 = vunpack.c.h.b16 %v1590
    %v1886 = vunpack.c.l.b16 %v1591
    %v1887 = vunpack.c.h.b16 %v1591
    %v1888 = vunpack.c.l.b16 %v1592
    %v1889 = vunpack.c.h.b16 %v1592
    %v1890 = vunpack.c.l.b16 %v1593
    %v1891 = vunpack.c.h.b16 %v1593
    %v1892 = vunpack.c.l.b16 %v1594
    %v1893 = vunpack.c.h.b16 %v1594
    %v1894 = vunpack.c.l.b16 %v1595
    %v1895 = vunpack.c.h.b16 %v1595
    %v1896 = vunpack.c.l.b16 %v1596
    %v1897 = vunpack.c.h.b16 %v1596
    %v1898 = vunpack.c.l.b16 %v1597
    %v1899 = vunpack.c.h.b16 %v1597
    %v1900 = vunpack.c.l.b16 %v1598
    %v1901 = vunpack.c.h.b16 %v1598
    %v1902 = vunpack.c.l.b16 %v1599
    %v1903 = vunpack.c.h.b16 %v1599
    %v1904 = vunpack.c.l.b16 %v1600
    %v1905 = vunpack.c.h.b16 %v1600
    %v1906 = vunpack.c.l.b16 %v1601
    %v1907 = vunpack.c.h.b16 %v1601
    %v1908 = vunpack.c.l.b16 %v1602
    %v1909 = vunpack.c.h.b16 %v1602
    %v1910 = vunpack.c.l.b16 %v1603
    %v1911 = vunpack.c.h.b16 %v1603
    %v1912 = vunpack.c.l.b16 %v1604
    %v1913 = vunpack.c.h.b16 %v1604
    %v1914 = vunpack.c.l.b16 %v1605
    %v1915 = vunpack.c.h.b16 %v1605
    %v1916 = vunpack.c.l.b16 %v1606
    %v1917 = vunpack.c.h.b16 %v1606
    %v1918 = vunpack.c.l.b16 %v1607
    %v1919 = vunpack.c.h.b16 %v1607
    %v1920 = vunpack.c.l.b16 %v1608
    %v1921 = vunpack.c.h.b16 %v1608
    %v1922 = vunpack.c.l.b16 %v1609
    %v1923 = vunpack.c.h.b16 %v1609
    %v1924 = vunpack.c.l.b16 %v1610
    %v1925 = vunpack.c.h.b16 %v1610
    %v1926 = vunpack.c.l.b16 %v1611
    %v1927 = vunpack.c.h.b16 %v1611
    %v1928 = vunpack.c.l.b16 %v1612
    %v1929 = vunpack.c.h.b16 %v1612
    %v1930 = vunpack.c.l.b16 %v1613
    %v1931 = vunpack.c.h.b16 %v1613
    %v1932 = vunpack.c.l.b16 %v1614
    %v1933 = vunpack.c.h.b16 %v1614
    %v1934 = vunpack.c.l.b16 %v1615
    %v1935 = vunpack.c.h.b16 %v1615
    %v1936 = vunpack.c.l.b16 %v1616
    %v1937 = vunpack.c.h.b16 %v1616
    %v1938 = vunpack.c.l.b16 %v1617
    %v1939 = vunpack.c.h.b16 %v1617
    %v1940 = vunpack.c.l.b16 %v1618
    %v1941 = vunpack.c.h.b16 %v1618
    %v1942 = vunpack.c.l.b16 %v1619
    %v1943 = vunpack.c.h.b16 %v1619
    %v1944 = vunpack.c.l.b16 %v1620
    %v1945 = vunpack.c.h.b16 %v1620
    %v1946 = vunpack.c.l.b16 %v1621
    %v1947 = vunpack.c.h.b16 %v1621
    %v1948 = vunpack.c.l.b16 %v1622
    %v1949 = vunpack.c.h.b16 %v1622
    %v1950 = vunpack.c.l.b16 %v1623
    %v1951 = vunpack.c.h.b16 %v1623
    %v1952 = vunpack.c.l.b16 %v1624
    %v1953 = vunpack.c.h.b16 %v1624
    %v1954 = vunpack.c.l.b16 %v1625
    %v1955 = vunpack.c.h.b16 %v1625
    %v1956 = vunpack.c.l.b16 %v1626
    %v1957 = vunpack.c.h.b16 %v1626
    %v1958 = vunpack.c.l.b16 %v1627
    %v1959 = vunpack.c.h.b16 %v1627
    %v1960 = vunpack.c.l.b16 %v1628
    %v1961 = vunpack.c.h.b16 %v1628
    %v1962 = vunpack.c.l.b16 %v1629
    %v1963 = vunpack.c.h.b16 %v1629
    %v1964 = vunpack.c.l.b16 %v1630
    %v1965 = vunpack.c.h.b16 %v1630
    %v1966 = vunpack.c.l.b16 %v1631
    %v1967 = vunpack.c.h.b16 %v1631
    %v1968 = vunpack.c.l.b16 %v1632
    %v1969 = vunpack.c.h.b16 %v1632
    %v1970 = vunpack.c.l.b16 %v1633
    %v1971 = vunpack.c.h.b16 %v1633
    %v1972 = vunpack.c.l.b16 %v1634
    %v1973 = vunpack.c.h.b16 %v1634
    %v1974 = vunpack.c.l.b16 %v1635
    %v1975 = vunpack.c.h.b16 %v1635
    %v1976 = vunpack.c.l.b16 %v1636
    %v1977 = vunpack.c.h.b16 %v1636
    %v1978 = vunpack.c.l.b16 %v1637
    %v1979 = vunpack.c.h.b16 %v1637
    %v1980 = vunpack.c.l.b16 %v1638
    %v1981 = vunpack.c.h.b16 %v1638
    %v1982 = vunpack.c.l.b16 %v1639
    %v1983 = vunpack.c.h.b16 %v1639
    %v1984 = vunpack.c.l.b16 %v1640
    %v1985 = vunpack.c.h.b16 %v1640
    %v1986 = vunpack.c.l.b16 %v1641
    %v1987 = vunpack.c.h.b16 %v1641
    %v1988 = vunpack.c.l.b16 %v1642
    %v1989 = vunpack.c.h.b16 %v1642
    %v1990 = vunpack.c.l.b16 %v1643
    %v1991 = vunpack.c.h.b16 %v1643
    %v1992 = vunpack.c.l.b16 %v1644
    %v1993 = vunpack.c.h.b16 %v1644
    %v1994 = vunpack.c.l.b16 %v1645
    %v1995 = vunpack.c.h.b16 %v1645
    %v1996 = vunpack.c.l.b16 %v1646
    %v1997 = vunpack.c.h.b16 %v1646
    %v1998 = vunpack.c.l.b16 %v1647
    %v1999 = vunpack.c.h.b16 %v1647
    %v2000 = vunpack.c.l.b16 %v1648
    %v2001 = vunpack.c.h.b16 %v1648
    %v2002 = vunpack.c.l.b16 %v1649
    %v2003 = vunpack.c.h.b16 %v1649
    %v2004 = vunpack.c.l.b16 %v1650
    %v2005 = vunpack.c.h.b16 %v1650
    %v2006 = vunpack.c.l.b16 %v1651
    %v2007 = vunpack.c.h.b16 %v1651
    %v2008 = vunpack.c.l.b16 %v1652
    %v2009 = vunpack.c.h.b16 %v1652
    %v2010 = vunpack.c.l.b16 %v1653
    %v2011 = vunpack.c.h.b16 %v1653
    %v2012 = vunpack.c.l.b16 %v1654
    %v2013 = vunpack.c.h.b16 %v1654
    %v2014 = vunpack.c.l.b16 %v1655
    %v2015 = vunpack.c.h.b16 %v1655
    %v2016 = vunpack.c.l.b16 %v1656
    %v2017 = vunpack.c.h.b16 %v1656
    %v2018 = vunpack.c.l.b16 %v1657
    %v2019 = vunpack.c.h.b16 %v1657
    %v2020 = vunpack.c.l.b16 %v1658
    %v2021 = vunpack.c.h.b16 %v1658
    %v2022 = vunpack.c.l.b16 %v1659
    %v2023 = vunpack.c.h.b16 %v1659
    %v2024 = vunpack.c.l.b16 %v1660
    %v2025 = vunpack.c.h.b16 %v1660
    %v2026 = vunpack.c.l.b16 %v1661
    %v2027 = vunpack.c.h.b16 %v1661
    %v2028 = vunpack.c.l.b16 %v1662
    %v2029 = vunpack.c.h.b16 %v1662
    %v2030 = vunpack.c.l.b16 %v1663
    %v2031 = vunpack.c.h.b16 %v1663
    %v2032 = vunpack.c.l.b16 %v1664
    %v2033 = vunpack.c.h.b16 %v1664
    %v2034 = vunpack.c.l.b16 %v1665
    %v2035 = vunpack.c.h.b16 %v1665
    %v2036 = vunpack.c.l.b16 %v1666
    %v2037 = vunpack.c.h.b16 %v1666
    %v2038 = vunpack.c.l.b16 %v1667
    %v2039 = vunpack.c.h.b16 %v1667
    %v2040 = vunpack.c.l.b16 %v1668
    %v2041 = vunpack.c.h.b16 %v1668
    %v2042 = vunpack.c.l.b16 %v1669
    %v2043 = vunpack.c.h.b16 %v1669
    %v2044 = vunpack.c.l.b16 %v1670
    %v2045 = vunpack.c.h.b16 %v1670
    %v2046 = vunpack.c.l.b16 %v1671
    %v2047 = vunpack.c.h.b16 %v1671
    %v2048 = vunpack.c.l.b16 %v1672
    %v2049 = vunpack.c.h.b16 %v1672
    %v2050 = vunpack.c.l.b16 %v1673
    %v2051 = vunpack.c.h.b16 %v1673
    %v2052 = vunpack.c.l.b16 %v1674
    %v2053 = vunpack.c.h.b16 %v1674
    %v2054 = vunpack.c.l.b16 %v1675
    %v2055 = vunpack.c.h.b16 %v1675
    %v2056 = vunpack.c.l.b16 %v1676
    %v2057 = vunpack.c.h.b16 %v1676
    %v2058 = vunpack.c.l.b16 %v1677
    %v2059 = vunpack.c.h.b16 %v1677
    %v2060 = vunpack.c.l.b16 %v1678
    %v2061 = vunpack.c.h.b16 %v1678
    %v2062 = vunpack.c.l.b16 %v1679
    %v2063 = vunpack.c.h.b16 %v1679
    %v2064 = vunpack.c.l.b16 %v1680
    %v2065 = vunpack.c.h.b16 %v1680
    %v2066 = vunpack.c.l.b16 %v1681
    %v2067 = vunpack.c.h.b16 %v1681
    %v2068 = vunpack.c.l.b16 %v1682
    %v2069 = vunpack.c.h.b16 %v1682
    %v2070 = vunpack.c.l.b16 %v1683
    %v2071 = vunpack.c.h.b16 %v1683
    %v2072 = vunpack.c.l.b16 %v1684
    %v2073 = vunpack.c.h.b16 %v1684
    %v2074 = vunpack.c.l.b16 %v1685
    %v2075 = vunpack.c.h.b16 %v1685
    %v2076 = vunpack.c.l.b16 %v1686
    %v2077 = vunpack.c.h.b16 %v1686
    %v2078 = vunpack.c.l.b16 %v1687
    %v2079 = vunpack.c.h.b16 %v1687
    %v2080 = vunpack.c.l.b16 %v1688
    %v2081 = vunpack.c.h.b16 %v1688
    %v2082 = vunpack.c.l.b16 %v1689
    %v2083 = vunpack.c.h.b16 %v1689
    %v2084 = vunpack.c.l.b16 %v1690
    %v2085 = vunpack.c.h.b16 %v1690
    %v2086 = vunpack.c.l.b16 %v1691
    %v2087 = vunpack.c.h.b16 %v1691
    %v2088 = vunpack.c.l.b16 %v1692
    %v2089 = vunpack.c.h.b16 %v1692
    %v2090 = vunpack.c.l.b16 %v1693
    %v2091 = vunpack.c.h.b16 %v1693
    %v2092 = vunpack.c.l.b16 %v1694
    %v2093 = vunpack.c.h.b16 %v1694
    %v2094 = vunpack.c.l.b16 %v1695
    %v2095 = vunpack.c.h.b16 %v1695
    %v2096 = vunpack.c.l.b16 %v1696
    %v2097 = vunpack.c.h.b16 %v1696
    %v2098 = vunpack.c.l.b16 %v1697
    %v2099 = vunpack.c.h.b16 %v1697
    %v2100 = vunpack.c.l.b16 %v1698
    %v2101 = vunpack.c.h.b16 %v1698
    %v2102 = vunpack.c.l.b16 %v1699
    %v2103 = vunpack.c.h.b16 %v1699
    %v2104 = vunpack.c.l.b16 %v1700
    %v2105 = vunpack.c.h.b16 %v1700
    %v2106 = vunpack.c.l.b16 %v1701
    %v2107 = vunpack.c.h.b16 %v1701
    %v2108 = vpack.c.b16 %v1856, %v1852
    %v2109 = vpack.c.b16 %v1857, %v1853
    %v2110 = vpack.c.b16 %v1858, %v1854
    %v2111 = vpack.c.b16 %v1859, %v1855
    %v2112 = vpack.c.b16 %v1864, %v1860
    %v2113 = vpack.c.b16 %v1865, %v1861
    %v2114 = vpack.c.b16 %v1866, %v1862
    %v2115 = vpack.c.b16 %v1867, %v1863
    %v2116 = vpack.c.b16 %v1872, %v1868
    %v2117 = vpack.c.b16 %v1873, %v1869
    %v2118 = vpack.c.b16 %v1874, %v1870
    %v2119 = vpack.c.b16 %v1875, %v1871
    %v2120 = vpack.c.b16 %v1880, %v1876
    %v2121 = vpack.c.b16 %v1881, %v1877
    %v2122 = vpack.c.b16 %v1882, %v1878
    %v2123 = vpack.c.b16 %v1883, %v1879
    %v2124 = vpack.c.b16 %v1888, %v1884
    %v2125 = vpack.c.b16 %v1889, %v1885
    %v2126 = vpack.c.b16 %v1890, %v1886
    %v2127 = vpack.c.b16 %v1891, %v1887
    %v2128 = vpack.c.b16 %v1896, %v1892
    %v2129 = vpack.c.b16 %v1897, %v1893
    %v2130 = vpack.c.b16 %v1898, %v1894
    %v2131 = vpack.c.b16 %v1899, %v1895
    %v2132 = vpack.c.b16 %v1904, %v1900
    %v2133 = vpack.c.b16 %v1905, %v1901
    %v2134 = vpack.c.b16 %v1906, %v1902
    %v2135 = vpack.c.b16 %v1907, %v1903
    %v2136 = vpack.c.b16 %v1912, %v1908
    %v2137 = vpack.c.b16 %v1913, %v1909
    %v2138 = vpack.c.b16 %v1914, %v1910
    %v2139 = vpack.c.b16 %v1915, %v1911
    %v2140 = vpack.c.b16 %v1920, %v1916
    %v2141 = vpack.c.b16 %v1921, %v1917
    %v2142 = vpack.c.b16 %v1922, %v1918
    %v2143 = vpack.c.b16 %v1923, %v1919
    %v2144 = vpack.c.b16 %v1928, %v1924
    %v2145 = vpack.c.b16 %v1929, %v1925
    %v2146 = vpack.c.b16 %v1930, %v1926
    %v2147 = vpack.c.b16 %v1931, %v1927
    %v2148 = vpack.c.b16 %v1936, %v1932
    %v2149 = vpack.c.b16 %v1937, %v1933
    %v2150 = vpack.c.b16 %v1938, %v1934
    %v2151 = vpack.c.b16 %v1939, %v1935
    %v2152 = vpack.c.b16 %v1944, %v1940
    %v2153 = vpack.c.b16 %v1945, %v1941
    %v2154 = vpack.c.b16 %v1946, %v1942
    %v2155 = vpack.c.b16 %v1947, %v1943
    %v2156 = vpack.c.b16 %v1952, %v1948
    %v2157 = vpack.c.b16 %v1953, %v1949
    %v2158 = vpack.c.b16 %v1954, %v1950
    %v2159 = vpack.c.b16 %v1955, %v1951
    %v2160 = vpack.c.b16 %v1960, %v1956
    %v2161 = vpack.c.b16 %v1961, %v1957
    %v2162 = vpack.c.b16 %v1962, %v1958
    %v2163 = vpack.c.b16 %v1963, %v1959
    %v2164 = vpack.c.b16 %v1968, %v1964
    %v2165 = vpack.c.b16 %v1969, %v1965
    %v2166 = vpack.c.b16 %v1970, %v1966
    %v2167 = vpack.c.b16 %v1971, %v1967
    %v2168 = vpack.c.b16 %v1976, %v1972
    %v2169 = vpack.c.b16 %v1977, %v1973
    %v2170 = vpack.c.b16 %v1978, %v1974
    %v2171 = vpack.c.b16 %v1979, %v1975
    %v2172 = vpack.c.b16 %v1984, %v1980
    %v2173 = vpack.c.b16 %v1985, %v1981
    %v2174 = vpack.c.b16 %v1986, %v1982
    %v2175 = vpack.c.b16 %v1987, %v1983
    %v2176 = vpack.c.b16 %v1992, %v1988
    %v2177 = vpack.c.b16 %v1993, %v1989
    %v2178 = vpack.c.b16 %v1994, %v1990
    %v2179 = vpack.c.b16 %v1995, %v1991
    %v2180 = vpack.c.b16 %v2000, %v1996
    %v2181 = vpack.c.b16 %v2001, %v1997
    %v2182 = vpack.c.b16 %v2002, %v1998
    %v2183 = vpack.c.b16 %v2003, %v1999
    %v2184 = vpack.c.b16 %v2008, %v2004
    %v2185 = vpack.c.b16 %v2009, %v2005
    %v2186 = vpack.c.b16 %v2010, %v2006
    %v2187 = vpack.c.b16 %v2011, %v2007
    %v2188 = vpack.c.b16 %v2016, %v2012
    %v2189 = vpack.c.b16 %v2017, %v2013
    %v2190 = vpack.c.b16 %v2018, %v2014
    %v2191 = vpack.c.b16 %v2019, %v2015
    %v2192 = vpack.c.b16 %v2024, %v2020
    %v2193 = vpack.c.b16 %v2025, %v2021
    %v2194 = vpack.c.b16 %v2026, %v2022
    %v2195 = vpack.c.b16 %v2027, %v2023
    %v2196 = vpack.c.b16 %v2032, %v2028
    %v2197 = vpack.c.b16 %v2033, %v2029
    %v2198 = vpack.c.b16 %v2034, %v2030
    %v2199 = vpack.c.b16 %v2035, %v2031
    %v2200 = vpack.c.b16 %v2040, %v2036
    %v2201 = vpack.c.b16 %v2041, %v2037
    %v2202 = vpack.c.b16 %v2042, %v2038
    %v2203 = vpack.c.b16 %v2043, %v2039
    %v2204 = vpack.c.b16 %v2048, %v2044
    %v2205 = vpack.c.b16 %v2049, %v2045
    %v2206 = vpack.c.b16 %v2050, %v2046
    %v2207 = vpack.c.b16 %v2051, %v2047
    %v2208 = vpack.c.b16 %v2056, %v2052
    %v2209 = vpack.c.b16 %v2057, %v2053
    %v2210 = vpack.c.b16 %v2058, %v2054
    %v2211 = vpack.c.b16 %v2059, %v2055
    %v2212 = vpack.c.b16 %v2064, %v2060
    %v2213 = vpack.c.b16 %v2065, %v2061
    %v2214 = vpack.c.b16 %v2066, %v2062
    %v2215 = vpack.c.b16 %v2067, %v2063
    %v2216 = vpack.c.b16 %v2072, %v2068
    %v2217 = vpack.c.b16 %v2073, %v2069
    %v2218 = vpack.c.b16 %v2074, %v2070
    %v2219 = vpack.c.b16 %v2075, %v2071
    %v2220 = vpack.c.b16 %v2080, %v2076
    %v2221 = vpack.c.b16 %v2081, %v2077
    %v2222 = vpack.c.b16 %v2082, %v2078
    %v2223 = vpack.c.b16 %v2083, %v2079
    %v2224 = vpack.c.b16 %v2088, %v2084
    %v2225 = vpack.c.b16 %v2089, %v2085
    %v2226 = vpack.c.b16 %v2090, %v2086
    %v2227 = vpack.c.b16 %v2091, %v2087
    %v2228 = vpack.c.b16 %v2096, %v2092
    %v2229 = vpack.c.b16 %v2097, %v2093
    %v2230 = vpack.c.b16 %v2098, %v2094
    %v2231 = vpack.c.b16 %v2099, %v2095
    %v2232 = vpack.c.b16 %v2104, %v2100
    %v2233 = vpack.c.b16 %v2105, %v2101
    %v2234 = vpack.c.b16 %v2106, %v2102
    %v2235 = vpack.c.b16 %v2107, %v2103
    %2364 = vmatprep.subr.bf16.mxu0 %v2137
    %2365 = vmatpush1.bf16.msra.mxu0 %v2136
    %2366 = vmatprep.subr.bf16.mxu0 %v2133
    %2367 = vmatpush1.bf16.msra.mxu0 %v2132
    %2368 = vmatprep.subr.bf16.mxu0 %v2129
    %2369 = vmatpush1.bf16.msra.mxu0 %v2128
    %2370 = vmatprep.subr.bf16.mxu0 %v2125
    %2371 = vmatpush1.bf16.msra.mxu0 %v2124
    %2372 = vmatprep.subr.bf16.mxu0 %v2121
    %2373 = vmatpush1.bf16.msra.mxu0 %v2120
    %2374 = vmatprep.subr.bf16.mxu0 %v2117
    %2375 = vmatpush1.bf16.msra.mxu0 %v2116
    %2376 = vmatprep.subr.bf16.mxu0 %v2113
    %2377 = vmatpush1.bf16.msra.mxu0 %v2112
    %2378 = vmatprep.subr.bf16.mxu0 %v2109
    %2379 = vmatpush1.bf16.msra.mxu0 %v2108
    %2380 = vmatprep.subr.bf16.mxu0 %v2169
    %2381 = vmatpush2.bf16.msra.mxu0 %v2168
    %2382 = vmatprep.subr.bf16.mxu0 %v2165
    %2383 = vmatpush2.bf16.msra.mxu0 %v2164
    %2384 = vmatprep.subr.bf16.mxu0 %v2161
    %2385 = vmatpush2.bf16.msra.mxu0 %v2160
    %2386 = vmatprep.subr.bf16.mxu0 %v2157
    %2387 = vmatpush2.bf16.msra.mxu0 %v2156
    %2388 = vmatprep.subr.bf16.mxu0 %v2153
    %2389 = vmatpush2.bf16.msra.mxu0 %v2152
    %2390 = vmatprep.subr.bf16.mxu0 %v2149
    %2391 = vmatpush2.bf16.msra.mxu0 %v2148
    %2392 = vmatprep.subr.bf16.mxu0 %v2145
    %2393 = vmatpush2.bf16.msra.mxu0 %v2144
    %2394 = vmatprep.subr.bf16.mxu0 %v2141
    %2395 = vmatpush2.bf16.msra.mxu0 %v2140
    %2396 = vmatprep.mubr.bf16.mxu0 %v1571
    %2397 = vmatmul.mubr.bf16.gmra.mxu0 %v1570
    %v2398 = vpop.f32.mrf.mxu0
    %v2399 = vadd.f32 %v1707, %v2398
    %v2400 = vpop.f32.mrf.mxu0
    %v2401 = vadd.f32 %v1711, %v2400
    %v2402 = vpop.f32.mrf.mxu0
    %v2403 = vpop.f32.mrf.mxu0
    %2404 = vdwg.mxu0
    %2405 = vmatprep.subr.bf16.mxu0 %v2201
    %2406 = vmatpush1.bf16.msra.mxu0 %v2200
    %2407 = vmatprep.subr.bf16.mxu0 %v2197
    %2408 = vmatpush1.bf16.msra.mxu0 %v2196
    %2409 = vmatprep.subr.bf16.mxu0 %v2193
    %2410 = vmatpush1.bf16.msra.mxu0 %v2192
    %2411 = vmatprep.subr.bf16.mxu0 %v2189
    %2412 = vmatpush1.bf16.msra.mxu0 %v2188
    %2413 = vmatprep.subr.bf16.mxu0 %v2185
    %2414 = vmatpush1.bf16.msra.mxu0 %v2184
    %2415 = vmatprep.subr.bf16.mxu0 %v2181
    %2416 = vmatpush1.bf16.msra.mxu0 %v2180
    %2417 = vmatprep.subr.bf16.mxu0 %v2177
    %2418 = vmatpush1.bf16.msra.mxu0 %v2176
    %2419 = vmatprep.subr.bf16.mxu0 %v2173
    %2420 = vmatpush1.bf16.msra.mxu0 %v2172
    %2421 = vmatprep.subr.bf16.mxu0 %v2233
    %2422 = vmatpush2.bf16.msra.mxu0 %v2232
    %2423 = vmatprep.subr.bf16.mxu0 %v2229
    %2424 = vmatpush2.bf16.msra.mxu0 %v2228
    %2425 = vmatprep.subr.bf16.mxu0 %v2225
    %2426 = vmatpush2.bf16.msra.mxu0 %v2224
    %2427 = vmatprep.subr.bf16.mxu0 %v2221
    %2428 = vmatpush2.bf16.msra.mxu0 %v2220
    %2429 = vmatprep.subr.bf16.mxu0 %v2217
    %2430 = vmatpush2.bf16.msra.mxu0 %v2216
    %2431 = vmatprep.subr.bf16.mxu0 %v2213
    %2432 = vmatpush2.bf16.msra.mxu0 %v2212
    %2433 = vmatprep.subr.bf16.mxu0 %v2209
    %2434 = vmatpush2.bf16.msra.mxu0 %v2208
    %2435 = vmatprep.subr.bf16.mxu0 %v2205
    %2436 = vmatpush2.bf16.msra.mxu0 %v2204
    %2437 = vmatprep.mubr.bf16.mxu0 %v1573
    %2438 = vmatmul.mubr.bf16.gmra.mxu0 %v1572
    %v2439 = vpop.f32.mrf.mxu0
    %v2440 = vadd.f32 %v2399, %v2439
    %v2441 = vpop.f32.mrf.mxu0
    %v2442 = vadd.f32 %v2401, %v2441
    %v2443 = vpop.f32.mrf.mxu0
    %v2444 = vpop.f32.mrf.mxu0
    %2445 = vdwg.mxu0
    %2446 = vmatprep.subr.bf16.mxu0 %v2139
    %2447 = vmatpush1.bf16.msra.mxu0 %v2138
    %2448 = vmatprep.subr.bf16.mxu0 %v2135
    %2449 = vmatpush1.bf16.msra.mxu0 %v2134
    %2450 = vmatprep.subr.bf16.mxu0 %v2131
    %2451 = vmatpush1.bf16.msra.mxu0 %v2130
    %2452 = vmatprep.subr.bf16.mxu0 %v2127
    %2453 = vmatpush1.bf16.msra.mxu0 %v2126
    %2454 = vmatprep.subr.bf16.mxu0 %v2123
    %2455 = vmatpush1.bf16.msra.mxu0 %v2122
    %2456 = vmatprep.subr.bf16.mxu0 %v2119
    %2457 = vmatpush1.bf16.msra.mxu0 %v2118
    %2458 = vmatprep.subr.bf16.mxu0 %v2115
    %2459 = vmatpush1.bf16.msra.mxu0 %v2114
    %2460 = vmatprep.subr.bf16.mxu0 %v2111
    %2461 = vmatpush1.bf16.msra.mxu0 %v2110
    %2462 = vmatprep.subr.bf16.mxu0 %v2171
    %2463 = vmatpush2.bf16.msra.mxu0 %v2170
    %2464 = vmatprep.subr.bf16.mxu0 %v2167
    %2465 = vmatpush2.bf16.msra.mxu0 %v2166
    %2466 = vmatprep.subr.bf16.mxu0 %v2163
    %2467 = vmatpush2.bf16.msra.mxu0 %v2162
    %2468 = vmatprep.subr.bf16.mxu0 %v2159
    %2469 = vmatpush2.bf16.msra.mxu0 %v2158
    %2470 = vmatprep.subr.bf16.mxu0 %v2155
    %2471 = vmatpush2.bf16.msra.mxu0 %v2154
    %2472 = vmatprep.subr.bf16.mxu0 %v2151
    %2473 = vmatpush2.bf16.msra.mxu0 %v2150
    %2474 = vmatprep.subr.bf16.mxu0 %v2147
    %2475 = vmatpush2.bf16.msra.mxu0 %v2146
    %2476 = vmatprep.subr.bf16.mxu0 %v2143
    %2477 = vmatpush2.bf16.msra.mxu0 %v2142
    %2478 = vmatprep.mubr.bf16.mxu0 %v1571
    %2479 = vmatmul.mubr.bf16.gmra.mxu0 %v1570
    %v2480 = vpop.f32.mrf.mxu0
    %v2481 = vadd.f32 %v1715, %v2480
    %v2482 = vpop.f32.mrf.mxu0
    %v2483 = vadd.f32 %v1719, %v2482
    %v2484 = vpop.f32.mrf.mxu0
    %v2485 = vpop.f32.mrf.mxu0
    %2486 = vdwg.mxu0
    %2487 = vmatprep.subr.bf16.mxu0 %v2203
    %2488 = vmatpush1.bf16.msra.mxu0 %v2202
    %2489 = vmatprep.subr.bf16.mxu0 %v2199
    %2490 = vmatpush1.bf16.msra.mxu0 %v2198
    %2491 = vmatprep.subr.bf16.mxu0 %v2195
    %2492 = vmatpush1.bf16.msra.mxu0 %v2194
    %2493 = vmatprep.subr.bf16.mxu0 %v2191
    %2494 = vmatpush1.bf16.msra.mxu0 %v2190
    %2495 = vmatprep.subr.bf16.mxu0 %v2187
    %2496 = vmatpush1.bf16.msra.mxu0 %v2186
    %2497 = vmatprep.subr.bf16.mxu0 %v2183
    %2498 = vmatpush1.bf16.msra.mxu0 %v2182
    %2499 = vmatprep.subr.bf16.mxu0 %v2179
    %2500 = vmatpush1.bf16.msra.mxu0 %v2178
    %2501 = vmatprep.subr.bf16.mxu0 %v2175
    %2502 = vmatpush1.bf16.msra.mxu0 %v2174
    %2503 = vmatprep.subr.bf16.mxu0 %v2235
    %2504 = vmatpush2.bf16.msra.mxu0 %v2234
    %2505 = vmatprep.subr.bf16.mxu0 %v2231
    %2506 = vmatpush2.bf16.msra.mxu0 %v2230
    %2507 = vmatprep.subr.bf16.mxu0 %v2227
    %2508 = vmatpush2.bf16.msra.mxu0 %v2226
    %2509 = vmatprep.subr.bf16.mxu0 %v2223
    %2510 = vmatpush2.bf16.msra.mxu0 %v2222
    %2511 = vmatprep.subr.bf16.mxu0 %v2219
    %2512 = vmatpush2.bf16.msra.mxu0 %v2218
    %2513 = vmatprep.subr.bf16.mxu0 %v2215
    %2514 = vmatpush2.bf16.msra.mxu0 %v2214
    %2515 = vmatprep.subr.bf16.mxu0 %v2211
    %2516 = vmatpush2.bf16.msra.mxu0 %v2210
    %2517 = vmatprep.subr.bf16.mxu0 %v2207
    %2518 = vmatpush2.bf16.msra.mxu0 %v2206
    %2519 = vmatprep.mubr.bf16.mxu0 %v1573
    %2520 = vmatmul.mubr.bf16.gmra.mxu0 %v1572
    %v2521 = vpop.f32.mrf.mxu0
    %v2522 = vadd.f32 %v2481, %v2521
    %v2523 = vpop.f32.mrf.mxu0
    %v2524 = vadd.f32 %v2483, %v2523
    %v2525 = vpop.f32.mrf.mxu0
    %v2526 = vpop.f32.mrf.mxu0
    %2527 = vdwg.mxu0
    %v2528 = vxor.u32 %v2440, 2147483648
    %v2529 = vxor.u32 %v2442, 2147483648
    %v2530 = vxor.u32 %v2522, 2147483648
    %v2531 = vxor.u32 %v2524, 2147483648
    %v2532 = vmul.f32 %v2528, 1.442695
    %v2533 = vpow.pop %v2532
    %v2534 = vmul.f32 %v2529, 1.442695
    %v2535 = vpow.pop %v2534
    %v2536 = vmul.f32 %v2530, 1.442695
    %v2537 = vpow.pop %v2536
    %v2538 = vmul.f32 %v2531, 1.442695
    %v2539 = vpow.pop %v2538
    %v2540 = vadd.f32 %v2533, 1.0
    %v2541 = vadd.f32 %v2535, 1.0
    %v2542 = vadd.f32 %v2537, 1.0
    %v2543 = vadd.f32 %v2539, 1.0
    %v2544 = vrcp.pop %v2540
    %v2545 = vmul.f32 1.0, %v2544
    %v2546 = vrcp.pop %v2541
    %v2547 = vmul.f32 1.0, %v2546
    %v2548 = vrcp.pop %v2542
    %v2549 = vmul.f32 1.0, %v2548
    %v2550 = vrcp.pop %v2543
    %v2551 = vmul.f32 1.0, %v2550
    %v2552 = vmul.f32 %v2440, %v2545
    %v2553 = vmul.f32 %v2442, %v2547
    %v2554 = vmul.f32 %v2522, %v2549
    %v2555 = vmul.f32 %v2524, %v2551
    %v2556 = vpack.c.bf16 %v2552, %v2552
    %v2557 = vpack.c.bf16 %v2553, %v2553
    %v2558 = vpack.c.bf16 %v2554, %v2554
    %v2559 = vpack.c.bf16 %v2555, %v2555
    %v2560 = vld [vmem:[#allocation8] sm:$0xf]
    %v2561 = vld [vmem:[#allocation8 + $0x4] sm:$0xf]
    %v2562 = vld [vmem:[#allocation8 + $0x8] sm:$0xf]
    %v2563 = vld [vmem:[#allocation8 + $0xc] sm:$0xf]
    %v2564 = vld [vmem:[#allocation8 + $0x10] sm:$0xf]
    %v2565 = vld [vmem:[#allocation8 + $0x14] sm:$0xf]
    %v2566 = vld [vmem:[#allocation8 + $0x18] sm:$0xf]
    %v2567 = vld [vmem:[#allocation8 + $0x1c] sm:$0xf]
    %v2568 = vld [vmem:[#allocation8 + $0x20] sm:$0xf]
    %v2569 = vld [vmem:[#allocation8 + $0x24] sm:$0xf]
    %v2570 = vld [vmem:[#allocation8 + $0x28] sm:$0xf]
    %v2571 = vld [vmem:[#allocation8 + $0x2c] sm:$0xf]
    %v2572 = vld [vmem:[#allocation8 + $0x30] sm:$0xf]
    %v2573 = vld [vmem:[#allocation8 + $0x34] sm:$0xf]
    %v2574 = vld [vmem:[#allocation8 + $0x38] sm:$0xf]
    %v2575 = vld [vmem:[#allocation8 + $0x3c] sm:$0xf]
    %v2576 = vld [vmem:[#allocation8 + $0x40] sm:$0xf]
    %v2577 = vld [vmem:[#allocation8 + $0x44] sm:$0xf]
    %v2578 = vld [vmem:[#allocation8 + $0x48] sm:$0xf]
    %v2579 = vld [vmem:[#allocation8 + $0x4c] sm:$0xf]
    %v2580 = vld [vmem:[#allocation8 + $0x50] sm:$0xf]
    %v2581 = vld [vmem:[#allocation8 + $0x54] sm:$0xf]
    %v2582 = vld [vmem:[#allocation8 + $0x58] sm:$0xf]
    %v2583 = vld [vmem:[#allocation8 + $0x5c] sm:$0xf]
    %v2584 = vld [vmem:[#allocation8 + $0x60] sm:$0xf]
    %v2585 = vld [vmem:[#allocation8 + $0x64] sm:$0xf]
    %v2586 = vld [vmem:[#allocation8 + $0x68] sm:$0xf]
    %v2587 = vld [vmem:[#allocation8 + $0x6c] sm:$0xf]
    %v2588 = vld [vmem:[#allocation8 + $0x70] sm:$0xf]
    %v2589 = vld [vmem:[#allocation8 + $0x74] sm:$0xf]
    %v2590 = vld [vmem:[#allocation8 + $0x78] sm:$0xf]
    %v2591 = vld [vmem:[#allocation8 + $0x7c] sm:$0xf]
    %v2592 = vld [vmem:[#allocation8 + $0x80] sm:$0xf]
    %v2593 = vld [vmem:[#allocation8 + $0x84] sm:$0xf]
    %v2594 = vld [vmem:[#allocation8 + $0x88] sm:$0xf]
    %v2595 = vld [vmem:[#allocation8 + $0x8c] sm:$0xf]
    %v2596 = vld [vmem:[#allocation8 + $0x90] sm:$0xf]
    %v2597 = vld [vmem:[#allocation8 + $0x94] sm:$0xf]
    %v2598 = vld [vmem:[#allocation8 + $0x98] sm:$0xf]
    %v2599 = vld [vmem:[#allocation8 + $0x9c] sm:$0xf]
    %v2600 = vld [vmem:[#allocation8 + $0xa0] sm:$0xf]
    %v2601 = vld [vmem:[#allocation8 + $0xa4] sm:$0xf]
    %v2602 = vld [vmem:[#allocation8 + $0xa8] sm:$0xf]
    %v2603 = vld [vmem:[#allocation8 + $0xac] sm:$0xf]
    %v2604 = vld [vmem:[#allocation8 + $0xb0] sm:$0xf]
    %v2605 = vld [vmem:[#allocation8 + $0xb4] sm:$0xf]
    %v2606 = vld [vmem:[#allocation8 + $0xb8] sm:$0xf]
    %v2607 = vld [vmem:[#allocation8 + $0xbc] sm:$0xf]
    %v2608 = vld [vmem:[#allocation8 + $0xc0] sm:$0xf]
    %v2609 = vld [vmem:[#allocation8 + $0xc4] sm:$0xf]
    %v2610 = vld [vmem:[#allocation8 + $0xc8] sm:$0xf]
    %v2611 = vld [vmem:[#allocation8 + $0xcc] sm:$0xf]
    %v2612 = vld [vmem:[#allocation8 + $0xd0] sm:$0xf]
    %v2613 = vld [vmem:[#allocation8 + $0xd4] sm:$0xf]
    %v2614 = vld [vmem:[#allocation8 + $0xd8] sm:$0xf]
    %v2615 = vld [vmem:[#allocation8 + $0xdc] sm:$0xf]
    %v2616 = vld [vmem:[#allocation8 + $0xe0] sm:$0xf]
    %v2617 = vld [vmem:[#allocation8 + $0xe4] sm:$0xf]
    %v2618 = vld [vmem:[#allocation8 + $0xe8] sm:$0xf]
    %v2619 = vld [vmem:[#allocation8 + $0xec] sm:$0xf]
    %v2620 = vld [vmem:[#allocation8 + $0xf0] sm:$0xf]
    %v2621 = vld [vmem:[#allocation8 + $0xf4] sm:$0xf]
    %v2622 = vld [vmem:[#allocation8 + $0xf8] sm:$0xf]
    %v2623 = vld [vmem:[#allocation8 + $0xfc] sm:$0xf]
    %v2624 = vld [vmem:[%s15] sm:$0x1]
    %v2626 = vlaneseq
    %v2627 = vshrl.u32 %v2626, 7
    %v2628 = vsub.s32 0, %v2627
    %v2629 = vrot.slane %v2624, %v2628
    %v2695 = vunpack.c.l.b16 %v2560
    %v2696 = vunpack.c.l.b16 %v2561
    %v2697 = vunpack.c.l.b16 %v2562
    %v2698 = vunpack.c.l.b16 %v2563
    %v2699 = vunpack.c.l.b16 %v2564
    %v2700 = vunpack.c.l.b16 %v2565
    %v2701 = vunpack.c.l.b16 %v2566
    %v2702 = vunpack.c.l.b16 %v2567
    %v2703 = vunpack.c.l.b16 %v2568
    %v2704 = vunpack.c.l.b16 %v2569
    %v2705 = vunpack.c.l.b16 %v2570
    %v2706 = vunpack.c.l.b16 %v2571
    %v2707 = vunpack.c.l.b16 %v2572
    %v2708 = vunpack.c.l.b16 %v2573
    %v2709 = vunpack.c.l.b16 %v2574
    %v2710 = vunpack.c.l.b16 %v2575
    %v2711 = vunpack.c.l.b16 %v2576
    %v2712 = vunpack.c.l.b16 %v2577
    %v2713 = vunpack.c.l.b16 %v2578
    %v2714 = vunpack.c.l.b16 %v2579
    %v2715 = vunpack.c.l.b16 %v2580
    %v2716 = vunpack.c.l.b16 %v2581
    %v2717 = vunpack.c.l.b16 %v2582
    %v2718 = vunpack.c.l.b16 %v2583
    %v2719 = vunpack.c.l.b16 %v2584
    %v2720 = vunpack.c.l.b16 %v2585
    %v2721 = vunpack.c.l.b16 %v2586
    %v2722 = vunpack.c.l.b16 %v2587
    %v2723 = vunpack.c.l.b16 %v2588
    %v2724 = vunpack.c.l.b16 %v2589
    %v2725 = vunpack.c.l.b16 %v2590
    %v2726 = vunpack.c.l.b16 %v2591
    %v2727 = vunpack.c.l.b16 %v2592
    %v2728 = vunpack.c.l.b16 %v2593
    %v2729 = vunpack.c.l.b16 %v2594
    %v2730 = vunpack.c.l.b16 %v2595
    %v2731 = vunpack.c.l.b16 %v2596
    %v2732 = vunpack.c.l.b16 %v2597
    %v2733 = vunpack.c.l.b16 %v2598
    %v2734 = vunpack.c.l.b16 %v2599
    %v2735 = vunpack.c.l.b16 %v2600
    %v2736 = vunpack.c.l.b16 %v2601
    %v2737 = vunpack.c.l.b16 %v2602
    %v2738 = vunpack.c.l.b16 %v2603
    %v2739 = vunpack.c.l.b16 %v2604
    %v2740 = vunpack.c.l.b16 %v2605
    %v2741 = vunpack.c.l.b16 %v2606
    %v2742 = vunpack.c.l.b16 %v2607
    %v2743 = vunpack.c.l.b16 %v2608
    %v2744 = vunpack.c.l.b16 %v2609
    %v2745 = vunpack.c.l.b16 %v2610
    %v2746 = vunpack.c.l.b16 %v2611
    %v2747 = vunpack.c.l.b16 %v2612
    %v2748 = vunpack.c.l.b16 %v2613
    %v2749 = vunpack.c.l.b16 %v2614
    %v2750 = vunpack.c.l.b16 %v2615
    %v2751 = vunpack.c.l.b16 %v2616
    %v2752 = vunpack.c.l.b16 %v2617
    %v2753 = vunpack.c.l.b16 %v2618
    %v2754 = vunpack.c.l.b16 %v2619
    %v2755 = vunpack.c.l.b16 %v2620
    %v2756 = vunpack.c.l.b16 %v2621
    %v2757 = vunpack.c.l.b16 %v2622
    %v2758 = vunpack.c.l.b16 %v2623
    %v2759 = vpack.c.b16 %v2696, %v2695
    %v2760 = vpack.c.b16 %v2698, %v2697
    %v2761 = vpack.c.b16 %v2700, %v2699
    %v2762 = vpack.c.b16 %v2702, %v2701
    %v2763 = vpack.c.b16 %v2704, %v2703
    %v2764 = vpack.c.b16 %v2706, %v2705
    %v2765 = vpack.c.b16 %v2708, %v2707
    %v2766 = vpack.c.b16 %v2710, %v2709
    %v2767 = vpack.c.b16 %v2712, %v2711
    %v2768 = vpack.c.b16 %v2714, %v2713
    %v2769 = vpack.c.b16 %v2716, %v2715
    %v2770 = vpack.c.b16 %v2718, %v2717
    %v2771 = vpack.c.b16 %v2720, %v2719
    %v2772 = vpack.c.b16 %v2722, %v2721
    %v2773 = vpack.c.b16 %v2724, %v2723
    %v2774 = vpack.c.b16 %v2726, %v2725
    %v2775 = vpack.c.b16 %v2728, %v2727
    %v2776 = vpack.c.b16 %v2730, %v2729
    %v2777 = vpack.c.b16 %v2732, %v2731
    %v2778 = vpack.c.b16 %v2734, %v2733
    %v2779 = vpack.c.b16 %v2736, %v2735
    %v2780 = vpack.c.b16 %v2738, %v2737
    %v2781 = vpack.c.b16 %v2740, %v2739
    %v2782 = vpack.c.b16 %v2742, %v2741
    %v2783 = vpack.c.b16 %v2744, %v2743
    %v2784 = vpack.c.b16 %v2746, %v2745
    %v2785 = vpack.c.b16 %v2748, %v2747
    %v2786 = vpack.c.b16 %v2750, %v2749
    %v2787 = vpack.c.b16 %v2752, %v2751
    %v2788 = vpack.c.b16 %v2754, %v2753
    %v2789 = vpack.c.b16 %v2756, %v2755
    %v2790 = vpack.c.b16 %v2758, %v2757
    %2823 = vmatprep.subr.bf16.mxu0 0
    %2824 = vmatpush1.bf16.msra.mxu0 %v2766
    %2825 = vmatprep.subr.bf16.mxu0 0
    %2826 = vmatpush1.bf16.msra.mxu0 %v2765
    %2827 = vmatprep.subr.bf16.mxu0 0
    %2828 = vmatpush1.bf16.msra.mxu0 %v2764
    %2829 = vmatprep.subr.bf16.mxu0 0
    %2830 = vmatpush1.bf16.msra.mxu0 %v2763
    %2831 = vmatprep.subr.bf16.mxu0 0
    %2832 = vmatpush1.bf16.msra.mxu0 %v2762
    %2833 = vmatprep.subr.bf16.mxu0 0
    %2834 = vmatpush1.bf16.msra.mxu0 %v2761
    %2835 = vmatprep.subr.bf16.mxu0 0
    %2836 = vmatpush1.bf16.msra.mxu0 %v2760
    %2837 = vmatprep.subr.bf16.mxu0 0
    %2838 = vmatpush1.bf16.msra.mxu0 %v2759
    %2839 = vmatprep.subr.bf16.mxu0 0
    %2840 = vmatpush2.bf16.msra.mxu0 %v2774
    %2841 = vmatprep.subr.bf16.mxu0 0
    %2842 = vmatpush2.bf16.msra.mxu0 %v2773
    %2843 = vmatprep.subr.bf16.mxu0 0
    %2844 = vmatpush2.bf16.msra.mxu0 %v2772
    %2845 = vmatprep.subr.bf16.mxu0 0
    %2846 = vmatpush2.bf16.msra.mxu0 %v2771
    %2847 = vmatprep.subr.bf16.mxu0 0
    %2848 = vmatpush2.bf16.msra.mxu0 %v2770
    %2849 = vmatprep.subr.bf16.mxu0 0
    %2850 = vmatpush2.bf16.msra.mxu0 %v2769
    %2851 = vmatprep.subr.bf16.mxu0 0
    %2852 = vmatpush2.bf16.msra.mxu0 %v2768
    %2853 = vmatprep.subr.bf16.mxu0 0
    %2854 = vmatpush2.bf16.msra.mxu0 %v2767
    %2855 = vmatprep.mubr.bf16.mxu0 %v2557
    %2856 = vmatmul.mubr.bf16.gmra.mxu0 %v2556
    %v2857 = vpop.f32.mrf.mxu0
    %v2858 = vadd.f32 %v2629, %v2857
    %v2859 = vpop.f32.mrf.mxu0
    %v2860 = vpop.f32.mrf.mxu0
    %v2861 = vpop.f32.mrf.mxu0
    %2862 = vdwg.mxu0
    %2863 = vmatprep.subr.bf16.mxu0 0
    %2864 = vmatpush1.bf16.msra.mxu0 %v2782
    %2865 = vmatprep.subr.bf16.mxu0 0
    %2866 = vmatpush1.bf16.msra.mxu0 %v2781
    %2867 = vmatprep.subr.bf16.mxu0 0
    %2868 = vmatpush1.bf16.msra.mxu0 %v2780
    %2869 = vmatprep.subr.bf16.mxu0 0
    %2870 = vmatpush1.bf16.msra.mxu0 %v2779
    %2871 = vmatprep.subr.bf16.mxu0 0
    %2872 = vmatpush1.bf16.msra.mxu0 %v2778
    %2873 = vmatprep.subr.bf16.mxu0 0
    %2874 = vmatpush1.bf16.msra.mxu0 %v2777
    %2875 = vmatprep.subr.bf16.mxu0 0
    %2876 = vmatpush1.bf16.msra.mxu0 %v2776
    %2877 = vmatprep.subr.bf16.mxu0 0
    %2878 = vmatpush1.bf16.msra.mxu0 %v2775
    %2879 = vmatprep.subr.bf16.mxu0 0
    %2880 = vmatpush2.bf16.msra.mxu0 %v2790
    %2881 = vmatprep.subr.bf16.mxu0 0
    %2882 = vmatpush2.bf16.msra.mxu0 %v2789
    %2883 = vmatprep.subr.bf16.mxu0 0
    %2884 = vmatpush2.bf16.msra.mxu0 %v2788
    %2885 = vmatprep.subr.bf16.mxu0 0
    %2886 = vmatpush2.bf16.msra.mxu0 %v2787
    %2887 = vmatprep.subr.bf16.mxu0 0
    %2888 = vmatpush2.bf16.msra.mxu0 %v2786
    %2889 = vmatprep.subr.bf16.mxu0 0
    %2890 = vmatpush2.bf16.msra.mxu0 %v2785
    %2891 = vmatprep.subr.bf16.mxu0 0
    %2892 = vmatpush2.bf16.msra.mxu0 %v2784
    %2893 = vmatprep.subr.bf16.mxu0 0
    %2894 = vmatpush2.bf16.msra.mxu0 %v2783
    %2895 = vmatprep.mubr.bf16.mxu0 %v2559
    %2896 = vmatmul.mubr.bf16.gmra.mxu0 %v2558
    %v2897 = vpop.f32.mrf.mxu0
    %v2898 = vadd.f32 %v2858, %v2897
    %v2899 = vpop.f32.mrf.mxu0
    %v2900 = vpop.f32.mrf.mxu0
    %v2901 = vpop.f32.mrf.mxu0
    %2902 = vdwg.mxu0
    %2903 = vst [vmem:[#allocation10] sm:$0xff] %v2898
    // Predicated region
    $region82: #{diff_ik_denoiser.1} parent=1 // pred_check
      _
    $region83: #{diff_ik_denoiser.1} parent=1 // pred_check_branch
      %2905 = sbr.rel (0) target = $region85
    $region84: #{diff_ik_denoiser.1} parent=1 // pred_region
      %s2907 = ssub.s32 128, 128
      %2908 = vsyncadd [#allocation4], %s2907
      %s2910 = sshll.u32 [#allocation10], 4
      %s2911 = int_to_ptr.vmem [resolvable:$true] %s2910
      %2913 = dma.vmem_to_hbm [thread:$0]  %s2911, 128, %s16, [#allocation4]
    $region85: #{diff_ik_denoiser.1} parent=1 // pred_fallthru
      _
    // Predicated region
    $region86: #{diff_ik_denoiser.1} parent=1 // pred_check
      _
    $region87: #{diff_ik_denoiser.1} parent=1 // pred_check_branch
      %2915 = sbr.rel (0) target = $region89
    $region88: #{diff_ik_denoiser.1} parent=1 // pred_region
      %2916 = dma.done [#allocation4], 128
    $region89: #{diff_ik_denoiser.1} parent=1 // pred_fallthru
      _
    %2917 = vsyncpa [#allocation3], 1
    %2918 = vsyncpa [#allocation6], 1
    %2919 = vsyncpa [#allocation9], 1
    %2920 = vsyncpa [#allocation4], 1

</llo_original>
